<compile_context>
chip_gen: v7x
topology: tpu7x:2x2x1
jax: 0.10.0
libtpu: 0.0.40
codegen_flags: <defaults>
</compile_context>

<pallas_src>
import functools

import jax
import jax.numpy as jnp
from jax import lax
from jax.experimental import pallas as pl
from jax.experimental.pallas import tpu as pltpu


def _round_up(x, m):
    return ((x + m - 1) // m) * m


def self_attention_kernel(q_ref, k_ref, v_ref,
                          wq_ref, bq_ref, wk_ref, bk_ref, wv_ref, bv_ref,
                          woq_ref, woa_ref, bo_ref,
                          out_ref,
                          qp_sc, m_sc, l_sc, acc_sc,
                          *, heads, k_len, kv_padded):
    kv = pl.program_id(2)
    n_kv = pl.num_programs(2)

    tq, e = qp_sc.shape
    depth = e // heads

    # ---- per-Q-tile init: project Q once, reset online-softmax state -------------
    @pl.when(kv == 0)
    def _init():
        q = q_ref[0].astype(jnp.bfloat16)                                  # (TQ, E)
        qp_sc[...] = (jnp.dot(q, wq_ref[...],
                              preferred_element_type=jnp.float32) + bq_ref[...])
        m_sc[...] = jnp.full_like(m_sc, -jnp.inf)
        l_sc[...] = jnp.zeros_like(l_sc)
        acc_sc[...] = jnp.zeros_like(acc_sc)

    # ---- project this K/V tile (softmax scale already folded into wk/bk) ---------
    kt = k_ref[0].astype(jnp.bfloat16)                                     # (TK, E)
    vt = v_ref[0].astype(jnp.bfloat16)
    kp = jnp.dot(kt, wk_ref[...], preferred_element_type=jnp.float32) + bk_ref[...]
    vp = jnp.dot(vt, wv_ref[...], preferred_element_type=jnp.float32) + bv_ref[...]
    tk = kp.shape[0]

    # head-major layouts for batched attention matmuls
    qh = jnp.swapaxes(qp_sc[...].reshape(tq, heads, depth), 0, 1).astype(jnp.bfloat16)
    kh = jnp.swapaxes(kp.reshape(tk, heads, depth), 0, 1).astype(jnp.bfloat16)
    vh = jnp.swapaxes(vp.reshape(tk, heads, depth), 0, 1).astype(jnp.bfloat16)

    # scores: (H, TQ, TK), f32
    energy = jnp.einsum('hqd,hkd->hqk', qh, kh, preferred_element_type=jnp.float32)

    if kv_padded:  # static: mask K columns past the true sequence length
        col = kv * tk + lax.broadcasted_iota(jnp.int32, energy.shape, 2)
        energy = jnp.where(col < k_len, energy, -1e30)

    # ---- online softmax update (f32) ---------------------------------------------
    m_prev = m_sc[...]                                                      # (H, TQ)
    m_new = jnp.maximum(m_prev, jnp.max(energy, axis=-1))
    alpha = jnp.exp(m_prev - m_new)
    p = jnp.exp(energy - m_new[:, :, None])                                 # (H, TQ, TK)
    l_sc[...] = alpha * l_sc[...] + jnp.sum(p, axis=-1)
    pv = jnp.einsum('hqk,hkd->hqd', p.astype(jnp.bfloat16), vh,
                    preferred_element_type=jnp.float32)                     # (H, TQ, D)
    acc_sc[...] = alpha[:, :, None] * acc_sc[...] + pv
    m_sc[...] = m_new

    # ---- finalize: normalize + fc_out (wo split: no concat needed) ---------------
    @pl.when(kv == n_kv - 1)
    def _finalize():
        inv_l = pl.reciprocal(l_sc[...], approx=True)                       # (H, TQ)
        out_h = (acc_sc[...] * inv_l[:, :, None]).astype(jnp.bfloat16)      # (H, TQ, D)
        # cat([q_proj, attn]) @ wo == q_proj @ wo[:E] + attn @ wo[E:]
        attn_part = jnp.sum(
            jnp.einsum('hqd,hde->hqe', out_h, woa_ref[...],
                       preferred_element_type=jnp.float32), axis=0)         # (TQ, E)
        q_part = jnp.dot(qp_sc[...].astype(jnp.bfloat16), woq_ref[...],
                         preferred_element_type=jnp.float32)                # (TQ, E)
        out_ref[0] = (q_part + attn_part + bo_ref[...]).astype(out_ref.dtype)


def self_attention(query, key, value, params, heads, mask=None):
    # `mask` intentionally ignored: the source applies a non-in-place masked_fill and
    # discards the result, so it never affects the output.
    del mask
    B, Lq, E = query.shape
    Lk = key.shape[1]
    D = E // heads
    scale = 1.0 / (D / 2.0)          # faithful to `energy / (depth ** 1 / 2)`

    # sequence tiles (8-aligned; 128 for long sequences)
    TQ = 128 if Lq >= 128 else _round_up(Lq, 8)
    TK = 128 if Lk >= 128 else _round_up(Lk, 8)
    Lq_p = _round_up(Lq, TQ)
    Lk_p = _round_up(Lk, TK)

    qf = query.astype(jnp.float32)
    kf = key.astype(jnp.float32)
    vf = value.astype(jnp.float32)
    if Lq_p != Lq:
        qf = jnp.pad(qf, ((0, 0), (0, Lq_p - Lq), (0, 0)))
    if Lk_p != Lk:
        kf = jnp.pad(kf, ((0, 0), (0, Lk_p - Lk), (0, 0)))
        vf = jnp.pad(vf, ((0, 0), (0, Lk_p - Lk), (0, 0)))

    # Block-diagonal projection weights: one full-width (E,E) matmul per projection.
    eye = jnp.eye(heads, dtype=jnp.float32)
    wq_bd = jnp.kron(eye, params['wq']).astype(jnp.bfloat16)                # (E, E)
    wk_bd = (jnp.kron(eye, params['wk']) * scale).astype(jnp.bfloat16)      # scale folded
    wv_bd = jnp.kron(eye, params['wv']).astype(jnp.bfloat16)
    bq_f = jnp.tile(params['bq'].reshape(1, D), (1, heads)).astype(jnp.float32)
    bk_f = (jnp.tile(params['bk'].reshape(1, D), (1, heads)) * scale).astype(jnp.float32)
    bv_f = jnp.tile(params['bv'].reshape(1, D), (1, heads)).astype(jnp.float32)
    wo = params['wo']                                                        # (2E, E)
    wo_q = wo[:E].astype(jnp.bfloat16)                                       # (E, E)
    wo_a = wo[E:].reshape(heads, D, E).astype(jnp.bfloat16)                  # (H, D, E)
    bo_f = params['bo'].reshape(1, E).astype(jnp.float32)

    weights = [wq_bd, bq_f, wk_bd, bk_f, wv_bd, bv_f, wo_q, wo_a, bo_f]

    q_spec = pl.BlockSpec((1, TQ, E), lambda b, qi, kv: (b, qi, 0))
    kv_spec = pl.BlockSpec((1, TK, E), lambda b, qi, kv: (b, kv, 0))
    o_spec = pl.BlockSpec((1, TQ, E), lambda b, qi, kv: (b, qi, 0))
    w_specs = [pl.BlockSpec(w.shape, (lambda b, qi, kv, nd=w.ndim: (0,) * nd))
               for w in weights]

    grid = (B, Lq_p // TQ, Lk_p // TK)

    kernel = functools.partial(self_attention_kernel, heads=heads,
                               k_len=Lk, kv_padded=(Lk_p != Lk))

    # VMEM budget from the chosen tiles (double-buffered blocks + weights + scratch);
    # capped at 64 MiB so the plan also fits v7x.
    block_bytes = 4 * (2 * TQ * E + 2 * TK * E)
    weight_bytes = int(sum(w.size * w.dtype.itemsize for w in weights))
    scratch_bytes = 4 * (TQ * E + 2 * heads * TQ + heads * TQ * D)
    est = 2 * (block_bytes + weight_bytes) + scratch_bytes
    vmem_limit = int(min(64 * 2**20, max(32 * 2**20, 2 * est)))

    out = pl.pallas_call(
        kernel,
        out_shape=jax.ShapeDtypeStruct((B, Lq_p, E), jnp.float32),
        grid_spec=pltpu.PrefetchScalarGridSpec(
            num_scalar_prefetch=0,
            grid=grid,
            in_specs=[q_spec, kv_spec, kv_spec] + w_specs,
            out_specs=o_spec,
            scratch_shapes=[
                pltpu.VMEM((TQ, E), jnp.float32),          # projected query tile
                pltpu.VMEM((heads, TQ), jnp.float32),      # running max  m
                pltpu.VMEM((heads, TQ), jnp.float32),      # running sum  l
                pltpu.VMEM((heads, TQ, D), jnp.float32),   # running weighted V
            ]),
        compiler_params=pltpu.CompilerParams(
            dimension_semantics=("parallel", "parallel", "arbitrary"),
            vmem_limit_bytes=vmem_limit),
    )(qf, kf, vf, *weights)

    if Lq_p != Lq:
        out = out[:, :Lq, :]
    return out


def reference(q, k, v, p, heads):
    """Pure-JAX f32 reference mirroring the PyTorch forward."""
    B, Lq, E = q.shape
    Lk = k.shape[1]
    D = E // heads
    qh = q.reshape(B, Lq, heads, D) @ p['wq'] + p['bq']
    kh = k.reshape(B, Lk, heads, D) @ p['wk'] + p['bk']
    vh = v.reshape(B, Lk, heads, D) @ p['wv'] + p['bv']
    energy = jnp.einsum('bqhd,bkhd->bhqk', qh, kh)
    attn = jax.nn.softmax(energy / (D / 2.0), axis=-1)     # faithful scale = 2/D
    out = jnp.einsum('bhqv,bvhd->bqhd', attn, vh).reshape(B, Lq, E)
    q_flat = qh.reshape(B, Lq, E)
    cat = jnp.concatenate([q_flat, out], axis=-1)
    return cat @ p['wo'] + p['bo']


def make_params(key, hidden, heads):
    """Weights in (in, out) layout, i.e. PyTorch `weight.T`."""
    D = hidden // heads
    ks = jax.random.split(key, 8)

    def rnd(k, shape, scale=0.1):
        return (scale * jax.random.normal(k, shape)).astype(jnp.float32)

    return {
        'wq': rnd(ks[0], (D, D)), 'bq': rnd(ks[1], (1, D)),
        'wk': rnd(ks[2], (D, D)), 'bk': rnd(ks[3], (1, D)),
        'wv': rnd(ks[4], (D, D)), 'bv': rnd(ks[5], (1, D)),
        'wo': rnd(ks[6], (2 * hidden, hidden)), 'bo': rnd(ks[7], (1, hidden)),
    }


if __name__ == "__main__":
    B, L, hidden, heads = 2, 8, 32, 4

    key = jax.random.PRNGKey(0)
    kq, kk, kv_, kp = jax.random.split(key, 4)
    q = jax.random.normal(kq, (B, L, hidden), dtype=jnp.float32)
    k = jax.random.normal(kk, (B, L, hidden), dtype=jnp.float32)
    v = jax.random.normal(kv_, (B, L, hidden), dtype=jnp.float32)
    params = make_params(kp, hidden, heads)

    out = self_attention(q, k, v, params, heads, mask=None)
    out = jax.block_until_ready(out)

    ref = reference(q, k, v, params, heads)
    assert out.shape == (B, L, hidden)
    err = float(jnp.max(jnp.abs(out - ref)))
    # kernel runs matmuls in bf16 (f32 accumulation) -> looser tolerance than pure-f32
    assert jnp.allclose(out, ref, atol=2e-2, rtol=2e-2), f"max abs err {err}"

    print("KERNEL_OK")
</pallas_src>

<mosaic_0001>
module attributes {stable_mosaic.version = 11 : i64} {
  func.func @self_attention_kernel(%arg0: i32, %arg1: i32, %arg2: i32, %arg3: memref<1x8x32xf32, #tpu.memory_space<vmem>>, %arg4: memref<1x8x32xf32, #tpu.memory_space<vmem>>, %arg5: memref<1x8x32xf32, #tpu.memory_space<vmem>>, %arg6: memref<32x32xbf16, #tpu.memory_space<vmem>>, %arg7: memref<1x32xf32, #tpu.memory_space<vmem>>, %arg8: memref<32x32xbf16, #tpu.memory_space<vmem>>, %arg9: memref<1x32xf32, #tpu.memory_space<vmem>>, %arg10: memref<32x32xbf16, #tpu.memory_space<vmem>>, %arg11: memref<1x32xf32, #tpu.memory_space<vmem>>, %arg12: memref<32x32xbf16, #tpu.memory_space<vmem>>, %arg13: memref<4x8x32xbf16, #tpu.memory_space<vmem>>, %arg14: memref<1x32xf32, #tpu.memory_space<vmem>>, %arg15: memref<1x8x32xf32, #tpu.memory_space<vmem>>, %arg16: memref<8x32xf32, #tpu.memory_space<vmem>>, %arg17: memref<4x8xf32, #tpu.memory_space<vmem>>, %arg18: memref<4x8xf32, #tpu.memory_space<vmem>>, %arg19: memref<4x8x8xf32, #tpu.memory_space<vmem>>) attributes {dimension_semantics = [#tpu.dimension_semantics<parallel>, #tpu.dimension_semantics<parallel>, #tpu.dimension_semantics<arbitrary>], iteration_bounds = array<i64: 2, 1, 1>, scalar_prefetch = 0 : i64, scratch_operands = 4 : i64, tpu.core_type = #tpu.core_type<tc>, window_params = [{transform_indices = @transform_0, window_bounds = array<i64: 1, 8, 32>}, {transform_indices = @transform_1, window_bounds = array<i64: 1, 8, 32>}, {transform_indices = @transform_2, window_bounds = array<i64: 1, 8, 32>}, {pipeline_mode = #tpu.pipeline_mode<synchronous>, transform_indices = @transform_3, window_bounds = array<i64: 32, 32>}, {pipeline_mode = #tpu.pipeline_mode<synchronous>, transform_indices = @transform_4, window_bounds = array<i64: 1, 32>}, {pipeline_mode = #tpu.pipeline_mode<synchronous>, transform_indices = @transform_5, window_bounds = array<i64: 32, 32>}, {pipeline_mode = #tpu.pipeline_mode<synchronous>, transform_indices = @transform_6, window_bounds = array<i64: 1, 32>}, {pipeline_mode = #tpu.pipeline_mode<synchronous>, transform_indices = @transform_7, window_bounds = array<i64: 32, 32>}, {pipeline_mode = #tpu.pipeline_mode<synchronous>, transform_indices = @transform_8, window_bounds = array<i64: 1, 32>}, {pipeline_mode = #tpu.pipeline_mode<synchronous>, transform_indices = @transform_9, window_bounds = array<i64: 32, 32>}, {pipeline_mode = #tpu.pipeline_mode<synchronous>, transform_indices = @transform_10, window_bounds = array<i64: 4, 8, 32>}, {pipeline_mode = #tpu.pipeline_mode<synchronous>, transform_indices = @transform_11, window_bounds = array<i64: 1, 32>}, {transform_indices = @transform_12, window_bounds = array<i64: 1, 8, 32>}]} {
    %c0_i32 = arith.constant 0 : i32
    %0 = arith.cmpi eq, %arg2, %c0_i32 : i32
    %1 = arith.extui %0 : i1 to i32
    %c0_i32_0 = arith.constant 0 : i32
    %2 = arith.cmpi ne, %1, %c0_i32_0 : i32
    scf.if %2 {
      %c0_37 = arith.constant 0 : index
      %c0_38 = arith.constant 0 : index
      %c0_39 = arith.constant 0 : index
      %56 = vector.load %arg3[%c0_37, %c0_38, %c0_39] : memref<1x8x32xf32, #tpu.memory_space<vmem>>, vector<1x8x32xf32>
      %57 = vector.shape_cast %56 : vector<1x8x32xf32> to vector<8x32xf32>
      %58 = arith.truncf %57 : vector<8x32xf32> to vector<8x32xbf16>
      %c0_40 = arith.constant 0 : index
      %c0_41 = arith.constant 0 : index
      %59 = vector.load %arg6[%c0_40, %c0_41] : memref<32x32xbf16, #tpu.memory_space<vmem>>, vector<32x32xbf16>
      %cst_42 = arith.constant dense<0.000000e+00> : vector<8x32xf32>
      %60 = tpu.matmul %58, %59, %cst_42 {dimension_numbers = #tpu.dot_dimension_numbers<[1], [0], [0], [1], [0, 0, 1, 1], [], []>} : vector<8x32xbf16>, vector<32x32xbf16>, vector<8x32xf32> -> vector<8x32xf32>
      %c0_43 = arith.constant 0 : index
      %c0_44 = arith.constant 0 : index
      %61 = vector.load %arg7[%c0_43, %c0_44] : memref<1x32xf32, #tpu.memory_space<vmem>>, vector<1x32xf32>
      %62 = vector.broadcast %61 : vector<1x32xf32> to vector<8x32xf32>
      %63 = arith.addf %60, %62 : vector<8x32xf32>
      %c0_45 = arith.constant 0 : index
      %c0_46 = arith.constant 0 : index
      %64 = vector.load %arg16[%c0_45, %c0_46] : memref<8x32xf32, #tpu.memory_space<vmem>>, vector<8x32xf32>
      tpu.vector_store %arg16[%c0_45, %c0_46], %63 {strides = array<i32>} : memref<8x32xf32, #tpu.memory_space<vmem>>, vector<8x32xf32>,
      %cst_47 = arith.constant 0xFF800000 : f32
      %65 = vector.broadcast %cst_47 : f32 to vector<4x8xf32>
      %c0_48 = arith.constant 0 : index
      %c0_49 = arith.constant 0 : index
      %66 = vector.load %arg17[%c0_48, %c0_49] : memref<4x8xf32, #tpu.memory_space<vmem>>, vector<4x8xf32>
      tpu.vector_store %arg17[%c0_48, %c0_49], %65 {strides = array<i32>} : memref<4x8xf32, #tpu.memory_space<vmem>>, vector<4x8xf32>,
      %cst_50 = arith.constant 0.000000e+00 : f32
      %67 = vector.broadcast %cst_50 : f32 to vector<4x8xf32>
      %c0_51 = arith.constant 0 : index
      %c0_52 = arith.constant 0 : index
      %68 = vector.load %arg18[%c0_51, %c0_52] : memref<4x8xf32, #tpu.memory_space<vmem>>, vector<4x8xf32>
      tpu.vector_store %arg18[%c0_51, %c0_52], %67 {strides = array<i32>} : memref<4x8xf32, #tpu.memory_space<vmem>>, vector<4x8xf32>,
      %cst_53 = arith.constant 0.000000e+00 : f32
      %69 = vector.broadcast %cst_53 : f32 to vector<4x8x8xf32>
      %c0_54 = arith.constant 0 : index
      %c0_55 = arith.constant 0 : index
      %c0_56 = arith.constant 0 : index
      %70 = vector.load %arg19[%c0_54, %c0_55, %c0_56] : memref<4x8x8xf32, #tpu.memory_space<vmem>>, vector<4x8x8xf32>
      tpu.vector_store %arg19[%c0_54, %c0_55, %c0_56], %69 {strides = array<i32>} : memref<4x8x8xf32, #tpu.memory_space<vmem>>, vector<4x8x8xf32>,
    } else {
    }
    %c0 = arith.constant 0 : index
    %c0_1 = arith.constant 0 : index
    %c0_2 = arith.constant 0 : index
    %3 = vector.load %arg4[%c0, %c0_1, %c0_2] : memref<1x8x32xf32, #tpu.memory_space<vmem>>, vector<1x8x32xf32>
    %4 = vector.shape_cast %3 : vector<1x8x32xf32> to vector<8x32xf32>
    %5 = arith.truncf %4 : vector<8x32xf32> to vector<8x32xbf16>
    %c0_3 = arith.constant 0 : index
    %c0_4 = arith.constant 0 : index
    %c0_5 = arith.constant 0 : index
    %6 = vector.load %arg5[%c0_3, %c0_4, %c0_5] : memref<1x8x32xf32, #tpu.memory_space<vmem>>, vector<1x8x32xf32>
    %7 = vector.shape_cast %6 : vector<1x8x32xf32> to vector<8x32xf32>
    %8 = arith.truncf %7 : vector<8x32xf32> to vector<8x32xbf16>
    %c0_6 = arith.constant 0 : index
    %c0_7 = arith.constant 0 : index
    %9 = vector.load %arg8[%c0_6, %c0_7] : memref<32x32xbf16, #tpu.memory_space<vmem>>, vector<32x32xbf16>
    %cst = arith.constant dense<0.000000e+00> : vector<8x32xf32>
    %10 = tpu.matmul %5, %9, %cst {dimension_numbers = #tpu.dot_dimension_numbers<[1], [0], [0], [1], [0, 0, 1, 1], [], []>} : vector<8x32xbf16>, vector<32x32xbf16>, vector<8x32xf32> -> vector<8x32xf32>
    %c0_8 = arith.constant 0 : index
    %c0_9 = arith.constant 0 : index
    %11 = vector.load %arg9[%c0_8, %c0_9] : memref<1x32xf32, #tpu.memory_space<vmem>>, vector<1x32xf32>
    %12 = vector.broadcast %11 : vector<1x32xf32> to vector<8x32xf32>
    %13 = arith.addf %10, %12 : vector<8x32xf32>
    %c0_10 = arith.constant 0 : index
    %c0_11 = arith.constant 0 : index
    %14 = vector.load %arg10[%c0_10, %c0_11] : memref<32x32xbf16, #tpu.memory_space<vmem>>, vector<32x32xbf16>
    %cst_12 = arith.constant dense<0.000000e+00> : vector<8x32xf32>
    %15 = tpu.matmul %8, %14, %cst_12 {dimension_numbers = #tpu.dot_dimension_numbers<[1], [0], [0], [1], [0, 0, 1, 1], [], []>} : vector<8x32xbf16>, vector<32x32xbf16>, vector<8x32xf32> -> vector<8x32xf32>
    %c0_13 = arith.constant 0 : index
    %c0_14 = arith.constant 0 : index
    %16 = vector.load %arg11[%c0_13, %c0_14] : memref<1x32xf32, #tpu.memory_space<vmem>>, vector<1x32xf32>
    %17 = vector.broadcast %16 : vector<1x32xf32> to vector<8x32xf32>
    %18 = arith.addf %15, %17 : vector<8x32xf32>
    %c0_15 = arith.constant 0 : index
    %c0_16 = arith.constant 0 : index
    %19 = vector.load %arg16[%c0_15, %c0_16] : memref<8x32xf32, #tpu.memory_space<vmem>>, vector<8x32xf32>
    %20 = vector.shape_cast %19 : vector<8x32xf32> to vector<8x4x8xf32>
    %21 = tpu.transpose %20, [1, 0, 2] : vector<8x4x8xf32> -> vector<4x8x8xf32>
    %22 = arith.truncf %21 : vector<4x8x8xf32> to vector<4x8x8xbf16>
    %23 = vector.shape_cast %13 : vector<8x32xf32> to vector<8x4x8xf32>
    %24 = tpu.transpose %23, [1, 0, 2] : vector<8x4x8xf32> -> vector<4x8x8xf32>
    %25 = arith.truncf %24 : vector<4x8x8xf32> to vector<4x8x8xbf16>
    %26 = vector.shape_cast %18 : vector<8x32xf32> to vector<8x4x8xf32>
    %27 = tpu.transpose %26, [1, 0, 2] : vector<8x4x8xf32> -> vector<4x8x8xf32>
    %28 = arith.truncf %27 : vector<4x8x8xf32> to vector<4x8x8xbf16>
    "tpu.trace_start"() <{level = 10 : i32, message = "hqd,hkd->hqk"}> : () -> ()
    %cst_17 = arith.constant dense<0.000000e+00> : vector<4x8x8xf32>
    %29 = tpu.matmul %22, %25, %cst_17 {dimension_numbers = #tpu.dot_dimension_numbers<[2], [2], [1], [1], [0, 0, 0, 1, 1, 1], [0], [0]>} : vector<4x8x8xbf16>, vector<4x8x8xbf16>, vector<4x8x8xf32> -> vector<4x8x8xf32>
    "tpu.trace_stop"() : () -> ()
    %c0_18 = arith.constant 0 : index
    %c0_19 = arith.constant 0 : index
    %30 = vector.load %arg17[%c0_18, %c0_19] : memref<4x8xf32, #tpu.memory_space<vmem>>, vector<4x8xf32>
    %cst_20 = arith.constant dense<0xFF800000> : vector<4x8xf32>
    %31 = vector.multi_reduction <maximumf>, %29, %cst_20 [2] : vector<4x8x8xf32> to vector<4x8xf32>
    %32 = arith.maximumf %30, %31 : vector<4x8xf32>
    %33 = arith.subf %30, %32 : vector<4x8xf32>
    %34 = math.exp %33 : vector<4x8xf32>
    %35 = vector.shape_cast %32 : vector<4x8xf32> to vector<4x8x1xf32>
    %36 = vector.broadcast %35 : vector<4x8x1xf32> to vector<4x8x8xf32>
    %37 = arith.subf %29, %36 : vector<4x8x8xf32>
    %38 = math.exp %37 : vector<4x8x8xf32>
    %c0_21 = arith.constant 0 : index
    %c0_22 = arith.constant 0 : index
    %39 = vector.load %arg18[%c0_21, %c0_22] : memref<4x8xf32, #tpu.memory_space<vmem>>, vector<4x8xf32>
    %40 = arith.mulf %34, %39 : vector<4x8xf32>
    %cst_23 = arith.constant dense<0.000000e+00> : vector<4x8xf32>
    %41 = vector.multi_reduction <add>, %38, %cst_23 [2] : vector<4x8x8xf32> to vector<4x8xf32>
    %42 = arith.addf %40, %41 : vector<4x8xf32>
    %c0_24 = arith.constant 0 : index
    %c0_25 = arith.constant 0 : index
    %43 = vector.load %arg18[%c0_24, %c0_25] : memref<4x8xf32, #tpu.memory_space<vmem>>, vector<4x8xf32>
    tpu.vector_store %arg18[%c0_24, %c0_25], %42 {strides = array<i32>} : memref<4x8xf32, #tpu.memory_space<vmem>>, vector<4x8xf32>,
    %44 = arith.truncf %38 : vector<4x8x8xf32> to vector<4x8x8xbf16>
    "tpu.trace_start"() <{level = 10 : i32, message = "hqk,hkd->hqd"}> : () -> ()
    %cst_26 = arith.constant dense<0.000000e+00> : vector<4x8x8xf32>
    %45 = tpu.matmul %44, %28, %cst_26 {dimension_numbers = #tpu.dot_dimension_numbers<[2], [1], [1], [2], [0, 0, 0, 1, 1, 2], [0], [0]>} : vector<4x8x8xbf16>, vector<4x8x8xbf16>, vector<4x8x8xf32> -> vector<4x8x8xf32>
    "tpu.trace_stop"() : () -> ()
    %46 = vector.shape_cast %34 : vector<4x8xf32> to vector<4x8x1xf32>
    %c0_27 = arith.constant 0 : index
    %c0_28 = arith.constant 0 : index
    %c0_29 = arith.constant 0 : index
    %47 = vector.load %arg19[%c0_27, %c0_28, %c0_29] : memref<4x8x8xf32, #tpu.memory_space<vmem>>, vector<4x8x8xf32>
    %48 = vector.broadcast %46 : vector<4x8x1xf32> to vector<4x8x8xf32>
    %49 = arith.mulf %48, %47 : vector<4x8x8xf32>
    %50 = arith.addf %49, %45 : vector<4x8x8xf32>
    %c0_30 = arith.constant 0 : index
    %c0_31 = arith.constant 0 : index
    %c0_32 = arith.constant 0 : index
    %51 = vector.load %arg19[%c0_30, %c0_31, %c0_32] : memref<4x8x8xf32, #tpu.memory_space<vmem>>, vector<4x8x8xf32>
    tpu.vector_store %arg19[%c0_30, %c0_31, %c0_32], %50 {strides = array<i32>} : memref<4x8x8xf32, #tpu.memory_space<vmem>>, vector<4x8x8xf32>,
    %c0_33 = arith.constant 0 : index
    %c0_34 = arith.constant 0 : index
    %52 = vector.load %arg17[%c0_33, %c0_34] : memref<4x8xf32, #tpu.memory_space<vmem>>, vector<4x8xf32>
    tpu.vector_store %arg17[%c0_33, %c0_34], %32 {strides = array<i32>} : memref<4x8xf32, #tpu.memory_space<vmem>>, vector<4x8xf32>,
    %c0_i32_35 = arith.constant 0 : i32
    %53 = arith.cmpi eq, %arg2, %c0_i32_35 : i32
    %54 = arith.extui %53 : i1 to i32
    %c0_i32_36 = arith.constant 0 : i32
    %55 = arith.cmpi ne, %54, %c0_i32_36 : i32
    scf.if %55 {
      %c0_37 = arith.constant 0 : index
      %c0_38 = arith.constant 0 : index
      %56 = vector.load %arg18[%c0_37, %c0_38] : memref<4x8xf32, #tpu.memory_space<vmem>>, vector<4x8xf32>
      %57 = tpu.reciprocal %56 {approx = true} : vector<4x8xf32> -> vector<4x8xf32>
      %c0_39 = arith.constant 0 : index
      %c0_40 = arith.constant 0 : index
      %c0_41 = arith.constant 0 : index
      %58 = vector.load %arg19[%c0_39, %c0_40, %c0_41] : memref<4x8x8xf32, #tpu.memory_space<vmem>>, vector<4x8x8xf32>
      %59 = vector.shape_cast %57 : vector<4x8xf32> to vector<4x8x1xf32>
      %60 = vector.broadcast %59 : vector<4x8x1xf32> to vector<4x8x8xf32>
      %61 = arith.mulf %58, %60 : vector<4x8x8xf32>
      %62 = arith.truncf %61 : vector<4x8x8xf32> to vector<4x8x8xbf16>
      %c0_42 = arith.constant 0 : index
      %c0_43 = arith.constant 0 : index
      %c0_44 = arith.constant 0 : index
      %63 = vector.load %arg13[%c0_42, %c0_43, %c0_44] : memref<4x8x32xbf16, #tpu.memory_space<vmem>>, vector<4x8x32xbf16>
      "tpu.trace_start"() <{level = 10 : i32, message = "hqd,hde->hqe"}> : () -> ()
      %cst_45 = arith.constant dense<0.000000e+00> : vector<4x8x32xf32>
      %64 = tpu.matmul %62, %63, %cst_45 {dimension_numbers = #tpu.dot_dimension_numbers<[2], [1], [1], [2], [0, 0, 0, 1, 1, 2], [0], [0]>} : vector<4x8x8xbf16>, vector<4x8x32xbf16>, vector<4x8x32xf32> -> vector<4x8x32xf32>
      "tpu.trace_stop"() : () -> ()
      %cst_46 = arith.constant dense<0.000000e+00> : vector<8x32xf32>
      %65 = vector.multi_reduction <add>, %64, %cst_46 [0] : vector<4x8x32xf32> to vector<8x32xf32>
      %c0_47 = arith.constant 0 : index
      %c0_48 = arith.constant 0 : index
      %66 = vector.load %arg16[%c0_47, %c0_48] : memref<8x32xf32, #tpu.memory_space<vmem>>, vector<8x32xf32>
      %67 = arith.truncf %66 : vector<8x32xf32> to vector<8x32xbf16>
      %c0_49 = arith.constant 0 : index
      %c0_50 = arith.constant 0 : index
      %68 = vector.load %arg12[%c0_49, %c0_50] : memref<32x32xbf16, #tpu.memory_space<vmem>>, vector<32x32xbf16>
      %cst_51 = arith.constant dense<0.000000e+00> : vector<8x32xf32>
      %69 = tpu.matmul %67, %68, %cst_51 {dimension_numbers = #tpu.dot_dimension_numbers<[1], [0], [0], [1], [0, 0, 1, 1], [], []>} : vector<8x32xbf16>, vector<32x32xbf16>, vector<8x32xf32> -> vector<8x32xf32>
      %70 = arith.addf %69, %65 : vector<8x32xf32>
      %c0_52 = arith.constant 0 : index
      %c0_53 = arith.constant 0 : index
      %71 = vector.load %arg14[%c0_52, %c0_53] : memref<1x32xf32, #tpu.memory_space<vmem>>, vector<1x32xf32>
      %72 = vector.broadcast %71 : vector<1x32xf32> to vector<8x32xf32>
      %73 = arith.addf %70, %72 : vector<8x32xf32>
      %c0_54 = arith.constant 0 : index
      %c0_55 = arith.constant 0 : index
      %c0_56 = arith.constant 0 : index
      %74 = vector.load %arg15[%c0_54, %c0_55, %c0_56] : memref<1x8x32xf32, #tpu.memory_space<vmem>>, vector<1x8x32xf32>
      %75 = vector.shape_cast %74 : vector<1x8x32xf32> to vector<8x32xf32>
      %76 = vector.shape_cast %73 : vector<8x32xf32> to vector<1x8x32xf32>
      tpu.vector_store %arg15[%c0_54, %c0_55, %c0_56], %76 {strides = array<i32>} : memref<1x8x32xf32, #tpu.memory_space<vmem>>, vector<1x8x32xf32>,
    } else {
    }
    return
  }
  func.func @transform_0(%arg0: i32, %arg1: i32, %arg2: i32) -> (i32, i32, i32) {
    %c0_i32 = arith.constant 0 : i32
    %c0_i32_0 = arith.constant 0 : i32
    return %arg0, %arg1, %c0_i32 : i32, i32, i32
  }
  func.func @transform_1(%arg0: i32, %arg1: i32, %arg2: i32) -> (i32, i32, i32) {
    %c0_i32 = arith.constant 0 : i32
    %c0_i32_0 = arith.constant 0 : i32
    return %arg0, %arg2, %c0_i32 : i32, i32, i32
  }
  func.func @transform_2(%arg0: i32, %arg1: i32, %arg2: i32) -> (i32, i32, i32) {
    %c0_i32 = arith.constant 0 : i32
    %c0_i32_0 = arith.constant 0 : i32
    return %arg0, %arg2, %c0_i32 : i32, i32, i32
  }
  func.func @transform_3(%arg0: i32, %arg1: i32, %arg2: i32) -> (i32, i32) {
    %c0_i32 = arith.constant 0 : i32
    %c0_i32_0 = arith.constant 0 : i32
    %c0_i32_1 = arith.constant 0 : i32
    return %c0_i32, %c0_i32_0 : i32, i32
  }
  func.func @transform_4(%arg0: i32, %arg1: i32, %arg2: i32) -> (i32, i32) {
    %c0_i32 = arith.constant 0 : i32
    %c0_i32_0 = arith.constant 0 : i32
    %c0_i32_1 = arith.constant 0 : i32
    return %c0_i32, %c0_i32_0 : i32, i32
  }
  func.func @transform_5(%arg0: i32, %arg1: i32, %arg2: i32) -> (i32, i32) {
    %c0_i32 = arith.constant 0 : i32
    %c0_i32_0 = arith.constant 0 : i32
    %c0_i32_1 = arith.constant 0 : i32
    return %c0_i32, %c0_i32_0 : i32, i32
  }
  func.func @transform_6(%arg0: i32, %arg1: i32, %arg2: i32) -> (i32, i32) {
    %c0_i32 = arith.constant 0 : i32
    %c0_i32_0 = arith.constant 0 : i32
    %c0_i32_1 = arith.constant 0 : i32
    return %c0_i32, %c0_i32_0 : i32, i32
  }
  func.func @transform_7(%arg0: i32, %arg1: i32, %arg2: i32) -> (i32, i32) {
    %c0_i32 = arith.constant 0 : i32
    %c0_i32_0 = arith.constant 0 : i32
    %c0_i32_1 = arith.constant 0 : i32
    return %c0_i32, %c0_i32_0 : i32, i32
  }
  func.func @transform_8(%arg0: i32, %arg1: i32, %arg2: i32) -> (i32, i32) {
    %c0_i32 = arith.constant 0 : i32
    %c0_i32_0 = arith.constant 0 : i32
    %c0_i32_1 = arith.constant 0 : i32
    return %c0_i32, %c0_i32_0 : i32, i32
  }
  func.func @transform_9(%arg0: i32, %arg1: i32, %arg2: i32) -> (i32, i32) {
    %c0_i32 = arith.constant 0 : i32
    %c0_i32_0 = arith.constant 0 : i32
    %c0_i32_1 = arith.constant 0 : i32
    return %c0_i32, %c0_i32_0 : i32, i32
  }
  func.func @transform_10(%arg0: i32, %arg1: i32, %arg2: i32) -> (i32, i32, i32) {
    %c0_i32 = arith.constant 0 : i32
    %c0_i32_0 = arith.constant 0 : i32
    %c0_i32_1 = arith.constant 0 : i32
    %c0_i32_2 = arith.constant 0 : i32
    return %c0_i32, %c0_i32_0, %c0_i32_1 : i32, i32, i32
  }
  func.func @transform_11(%arg0: i32, %arg1: i32, %arg2: i32) -> (i32, i32) {
    %c0_i32 = arith.constant 0 : i32
    %c0_i32_0 = arith.constant 0 : i32
    %c0_i32_1 = arith.constant 0 : i32
    return %c0_i32, %c0_i32_0 : i32, i32
  }
  func.func @transform_12(%arg0: i32, %arg1: i32, %arg2: i32) -> (i32, i32, i32) {
    %c0_i32 = arith.constant 0 : i32
    %c0_i32_0 = arith.constant 0 : i32
    return %arg0, %arg1, %c0_i32 : i32, i32, i32
  }
}

</mosaic_0001>

<llo_original>
// kernel: tpu_custom_call.1
$region0: #{tpu_custom_call.1}
  #allocation0 [shape = 'u32[]', space=smem, size = 0x4, offset = 0x4, fixed_abs, tag = 'smem constant byte address 0x4 - core index']
  #allocation1 [shape = 'u32[144,128]{1,0:T(1,128)}', space=vmem, size = 0x12000, scoped, tag = 'internal scratch']
  #allocation2 [shape = 'f32[8,32]{1,0:T(8,128)}', space=vmem, size = 0x1000, scoped, tag = 'scratch operand']
  #allocation3 [shape = 'f32[4,8]{1,0:T(4,128)}', space=vmem, size = 0x800, scoped, tag = 'scratch operand']
  #allocation4 [shape = 'f32[4,8]{1,0:T(4,128)}', space=vmem, size = 0x800, scoped, tag = 'scratch operand']
  #allocation5 [shape = 'f32[4,8,8]{2,1,0:T(8,128)}', space=vmem, size = 0x4000, scoped, tag = 'scratch operand']
  %s0 = inlined_call_operand.hbm [shape: f32[2,8,32], index: 0, kind: input, shape index: {}]
  %s1 = inlined_call_operand.hbm [shape: f32[2,8,32], index: 1, kind: input, shape index: {}]
  %s2 = inlined_call_operand.hbm [shape: f32[2,8,32], index: 2, kind: input, shape index: {}]
  %s3 = inlined_call_operand.hbm [shape: bf16[32,32], index: 3, kind: input, shape index: {}]
  %s4 = inlined_call_operand.vmem [shape: f32[1,32], index: 4, kind: input, shape index: {}]
  %s5 = inlined_call_operand.vmem [shape: bf16[32,32], index: 5, kind: input, shape index: {}]
  %s6 = inlined_call_operand.vmem [shape: f32[1,32], index: 6, kind: input, shape index: {}]
  %s7 = inlined_call_operand.hbm [shape: bf16[32,32], index: 7, kind: input, shape index: {}]
  %s8 = inlined_call_operand.hbm [shape: f32[1,32], index: 8, kind: input, shape index: {}]
  %s9 = inlined_call_operand.vmem [shape: bf16[32,32], index: 9, kind: input, shape index: {}]
  %s10 = inlined_call_operand.hbm [shape: bf16[4,8,32], index: 10, kind: input, shape index: {}]
  %s11 = inlined_call_operand.vmem [shape: f32[1,32], index: 11, kind: input, shape index: {}]
  %s12 = inlined_call_operand.hbm [shape: f32[2,8,32], index: 12, kind: output, shape index: {}]
  %s13 = sld [smem:[#allocation0]]
  $region117: #{tpu_custom_call.1} parent=0
    _
  %s15 = ssub.s32 1, %s13
  %s16 = scalar_select 0, %s15, %s13
  $region1: #{tpu_custom_call.1} parent=0
    #allocation6 [shape = 'u8[8192]{0}', space=vmem, size = 0x2000, scoped, tag = 'input window, operand 0']
    #allocation7 [shape = 's32[2]{0}', space=sflag, size = 0x8, scoped, tag = 'scoped memory for tpu_custom_call.1']
    #allocation8 [shape = 's32[2]{0}', space=sflag, size = 0x8, scoped, tag = 'scoped memory for tpu_custom_call.1']
    #allocation9 [shape = 'u8[8192]{0}', space=vmem, size = 0x2000, scoped, tag = 'input window, operand 1']
    #allocation10 [shape = 's32[2]{0}', space=sflag, size = 0x8, scoped, tag = 'scoped memory for tpu_custom_call.1']
    #allocation11 [shape = 'u8[8192]{0}', space=vmem, size = 0x2000, scoped, tag = 'input window, operand 2']
    #allocation12 [shape = 'u8[8192]{0}', space=vmem, size = 0x2000, scoped, tag = 'input window, operand 3, single buffered']
    #allocation13 [shape = 's32[1]{0}', space=sflag, size = 0x4, scoped, tag = 'scoped memory for tpu_custom_call.1']
    #allocation14 [shape = 'u8[8192]{0}', space=vmem, size = 0x2000, scoped, tag = 'input window, operand 7, single buffered']
    #allocation15 [shape = 'u8[512]{0}', space=vmem, size = 0x400, scoped, tag = 'input window, operand 8, single buffered']
    #allocation16 [shape = 's32[1]{0}', space=sflag, size = 0x4, scoped, tag = 'scoped memory for tpu_custom_call.1']
    #allocation17 [shape = 'u8[8192]{0}', space=vmem, size = 0x2000, scoped, tag = 'input window, operand 10, single buffered']
    #allocation18 [shape = 'u8[8192]{0}', space=vmem, size = 0x2000, scoped, tag = 'output window, operand 0']
    %17 = vsyncpa [#allocation7], 0
    %s18 = scalar_lea.sflag [#allocation7], 1
    %19 = vsyncpa %s18, 0
    %20 = vsyncpa [#allocation10], 0
    %s21 = scalar_lea.sflag [#allocation10], 1
    %22 = vsyncpa %s21, 0
    %23 = vsyncpa [#allocation13], 0
    %24 = vsyncpa [#allocation16], 0
    %25 = vsyncpa [#allocation8], 0
    %s26 = scalar_lea.sflag [#allocation8], 1
    %27 = vsyncpa %s26, 0
    loop: start=0, step=1, limit=4
    $region2: #{tpu_custom_call.1} parent=1 // loop_pre_header
      _
    $region3: #{tpu_custom_call.1} parent=1 // loop_header
      %s29 = sphi 0, %s33
      %p30 = scmp.ge.s32.totalorder %s29, 4
      %s36 = sphi 0, %s55
      %s37 = sphi 0, %s51
      %s38 = sphi 0, %s47
      %s39 = sphi 0, %s36
      %s40 = sphi 0, %s37
      %s41 = sphi 0, %s38
      %s42 = sphi 0, %s39
      %s43 = sphi 0, %s40
      %s44 = sphi 0, %s41
      %s60 = sphi 0, %s62
      %s63 = sphi 0, %s60
      %s64 = sphi 0, %s63
      %s80 = sphi 0, %s64
      %s88 = sphi 0, %s90
      %s91 = sphi 0, %s88
      %s92 = sphi 0, %s91
      %s108 = sphi 0, %s92
      %s116 = sphi 0, %s118
      %s119 = sphi 0, %s116
      %s120 = sphi 0, %s119
      %s136 = sphi 0, %s120
      %s140 = sphi 0, %s140
      %s142 = sphi 0, %s140
      %s143 = sphi 0, %s142
      %s157 = sphi 0, %s143
      %s161 = sphi 0, %s161
      %s163 = sphi 0, %s161
      %s164 = sphi 0, %s163
      %s178 = sphi 0, %s164
      %s182 = sphi 0, %s182
      %s184 = sphi 0, %s182
      %s185 = sphi 0, %s184
      %s199 = sphi 0, %s185
      %s203 = sphi 0, %s203
      %s205 = sphi 0, %s203
      %s206 = sphi 0, %s205
      %s220 = sphi 0, %s206
      %s224 = sphi 0, %s224
      %s226 = sphi 0, %s224
      %s227 = sphi 0, %s226
      %s241 = sphi 0, %s227
      %s245 = sphi 0, %s245
      %s247 = sphi 0, %s245
      %s248 = sphi 0, %s247
      %s262 = sphi 0, %s248
      %s266 = sphi 0, %s266
      %s268 = sphi 0, %s266
      %s269 = sphi 0, %s268
      %s283 = sphi 0, %s269
      %s287 = sphi 0, %s287
      %s289 = sphi 0, %s287
      %s290 = sphi 0, %s289
      %s304 = sphi 0, %s290
      %s308 = sphi 0, %s308
      %s310 = sphi 0, %s308
      %s311 = sphi 0, %s310
      %s325 = sphi 0, %s311
      %s333 = sphi 0, %s335
      %s336 = sphi 0, %s333
      %s337 = sphi 0, %s336
      %s353 = sphi 0, %s337
    $region4: #{tpu_custom_call.1} parent=1 // loop_header_branch
      %32 = sbr.rel (%p30) target = $region8
    $region5: #{tpu_custom_call.1} parent=1 // loop_body
      %s34 = ssub.s32 %s29, 1
      %s35 = ssub.s32 %s29, 2
      %s45 = sadd.s32 1, %s38
      %p46 = scmp.ge.s32.totalorder %s45, 1
      %s47 = scalar_select %p46, 0, %s45
      %s48 = sadd.s32 1, %s37
      %s49 = scalar_select %p46, %s48, %s37
      %p50 = scmp.ge.s32.totalorder %s49, 1
      %s51 = scalar_select %p50, 0, %s49
      %s52 = sadd.s32 1, %s36
      %s53 = scalar_select %p50, %s52, %s36
      %p54 = scmp.ge.s32.totalorder %s53, 2
      %s55 = scalar_select %p54, 0, %s53
      %s56 = ssub.s32 %s36, %s55
      %s57 = ssub.s32 %s37, %s51
      %s58 = sor.u32 %s56, %s57
      %p59 = scmp.eq.s32.totalorder %s58, 0
      %s61 = sadd.s32 %s60, 1
      %s62 = scalar_select %p59, %s60, %s61
      %p65 = pneg %p59
      %p66 = scmp.eq.s32.totalorder %s29, 1
      %p67 = por %p65, %p66
      %p68 = scmp.ne.s32.totalorder %s60, %s63
      %p69 = scmp.eq.s32.totalorder %s29, 0
      %p70 = por %p68, %p69
      %p71 = scmp.ne.s32.totalorder %s60, %s63
      %p72 = scmp.eq.s32.totalorder %s34, 1
      %p73 = por %p71, %p72
      %p74 = scmp.ne.s32.totalorder %s63, %s64
      %p75 = scmp.eq.s32.totalorder %s34, 0
      %p76 = por %p74, %p75
      %p77 = scmp.ne.s32.totalorder %s63, %s64
      %p78 = scmp.eq.s32.totalorder %s35, 1
      %p79 = por %p77, %p78
      %p81 = scmp.ne.s32.totalorder %s64, %s80
      %p82 = scmp.eq.s32.totalorder %s35, 0
      %p83 = por %p81, %p82
      %s84 = ssub.s32 %s36, %s55
      %s85 = ssub.s32 %s38, %s47
      %s86 = sor.u32 %s84, %s85
      %p87 = scmp.eq.s32.totalorder %s86, 0
      %s89 = sadd.s32 %s88, 1
      %s90 = scalar_select %p87, %s88, %s89
      %p93 = pneg %p87
      %p94 = scmp.eq.s32.totalorder %s29, 1
      %p95 = por %p93, %p94
      %p96 = scmp.ne.s32.totalorder %s88, %s91
      %p97 = scmp.eq.s32.totalorder %s29, 0
      %p98 = por %p96, %p97
      %p99 = scmp.ne.s32.totalorder %s88, %s91
      %p100 = scmp.eq.s32.totalorder %s34, 1
      %p101 = por %p99, %p100
      %p102 = scmp.ne.s32.totalorder %s91, %s92
      %p103 = scmp.eq.s32.totalorder %s34, 0
      %p104 = por %p102, %p103
      %p105 = scmp.ne.s32.totalorder %s91, %s92
      %p106 = scmp.eq.s32.totalorder %s35, 1
      %p107 = por %p105, %p106
      %p109 = scmp.ne.s32.totalorder %s92, %s108
      %p110 = scmp.eq.s32.totalorder %s35, 0
      %p111 = por %p109, %p110
      %s112 = ssub.s32 %s36, %s55
      %s113 = ssub.s32 %s38, %s47
      %s114 = sor.u32 %s112, %s113
      %p115 = scmp.eq.s32.totalorder %s114, 0
      %s117 = sadd.s32 %s116, 1
      %s118 = scalar_select %p115, %s116, %s117
      %p121 = pneg %p115
      %p122 = scmp.eq.s32.totalorder %s29, 1
      %p123 = por %p121, %p122
      %p124 = scmp.ne.s32.totalorder %s116, %s119
      %p125 = scmp.eq.s32.totalorder %s29, 0
      %p126 = por %p124, %p125
      %p127 = scmp.ne.s32.totalorder %s116, %s119
      %p128 = scmp.eq.s32.totalorder %s34, 1
      %p129 = por %p127, %p128
      %p130 = scmp.ne.s32.totalorder %s119, %s120
      %p131 = scmp.eq.s32.totalorder %s34, 0
      %p132 = por %p130, %p131
      %p133 = scmp.ne.s32.totalorder %s119, %s120
      %p134 = scmp.eq.s32.totalorder %s35, 1
      %p135 = por %p133, %p134
      %p137 = scmp.ne.s32.totalorder %s120, %s136
      %p138 = scmp.eq.s32.totalorder %s35, 0
      %p139 = por %p137, %p138
      %s141 = sadd.s32 %s140, 1
      %p144 = scmp.eq.s32.totalorder %s29, 1
      %p145 = scmp.ne.s32.totalorder %s140, %s142
      %p146 = scmp.eq.s32.totalorder %s29, 0
      %p147 = por %p145, %p146
      %p148 = scmp.ne.s32.totalorder %s140, %s142
      %p149 = scmp.eq.s32.totalorder %s34, 1
      %p150 = por %p148, %p149
      %p151 = scmp.ne.s32.totalorder %s142, %s143
      %p152 = scmp.eq.s32.totalorder %s34, 0
      %p153 = por %p151, %p152
      %p154 = scmp.ne.s32.totalorder %s142, %s143
      %p155 = scmp.eq.s32.totalorder %s35, 1
      %p156 = por %p154, %p155
      %p158 = scmp.ne.s32.totalorder %s143, %s157
      %p159 = scmp.eq.s32.totalorder %s35, 0
      %p160 = por %p158, %p159
      %s162 = sadd.s32 %s161, 1
      %p165 = scmp.eq.s32.totalorder %s29, 1
      %p166 = scmp.ne.s32.totalorder %s161, %s163
      %p167 = scmp.eq.s32.totalorder %s29, 0
      %p168 = por %p166, %p167
      %p169 = scmp.ne.s32.totalorder %s161, %s163
      %p170 = scmp.eq.s32.totalorder %s34, 1
      %p171 = por %p169, %p170
      %p172 = scmp.ne.s32.totalorder %s163, %s164
      %p173 = scmp.eq.s32.totalorder %s34, 0
      %p174 = por %p172, %p173
      %p175 = scmp.ne.s32.totalorder %s163, %s164
      %p176 = scmp.eq.s32.totalorder %s35, 1
      %p177 = por %p175, %p176
      %p179 = scmp.ne.s32.totalorder %s164, %s178
      %p180 = scmp.eq.s32.totalorder %s35, 0
      %p181 = por %p179, %p180
      %s183 = sadd.s32 %s182, 1
      %p186 = scmp.eq.s32.totalorder %s29, 1
      %p187 = scmp.ne.s32.totalorder %s182, %s184
      %p188 = scmp.eq.s32.totalorder %s29, 0
      %p189 = por %p187, %p188
      %p190 = scmp.ne.s32.totalorder %s182, %s184
      %p191 = scmp.eq.s32.totalorder %s34, 1
      %p192 = por %p190, %p191
      %p193 = scmp.ne.s32.totalorder %s184, %s185
      %p194 = scmp.eq.s32.totalorder %s34, 0
      %p195 = por %p193, %p194
      %p196 = scmp.ne.s32.totalorder %s184, %s185
      %p197 = scmp.eq.s32.totalorder %s35, 1
      %p198 = por %p196, %p197
      %p200 = scmp.ne.s32.totalorder %s185, %s199
      %p201 = scmp.eq.s32.totalorder %s35, 0
      %p202 = por %p200, %p201
      %s204 = sadd.s32 %s203, 1
      %p207 = scmp.eq.s32.totalorder %s29, 1
      %p208 = scmp.ne.s32.totalorder %s203, %s205
      %p209 = scmp.eq.s32.totalorder %s29, 0
      %p210 = por %p208, %p209
      %p211 = scmp.ne.s32.totalorder %s203, %s205
      %p212 = scmp.eq.s32.totalorder %s34, 1
      %p213 = por %p211, %p212
      %p214 = scmp.ne.s32.totalorder %s205, %s206
      %p215 = scmp.eq.s32.totalorder %s34, 0
      %p216 = por %p214, %p215
      %p217 = scmp.ne.s32.totalorder %s205, %s206
      %p218 = scmp.eq.s32.totalorder %s35, 1
      %p219 = por %p217, %p218
      %p221 = scmp.ne.s32.totalorder %s206, %s220
      %p222 = scmp.eq.s32.totalorder %s35, 0
      %p223 = por %p221, %p222
      %s225 = sadd.s32 %s224, 1
      %p228 = scmp.eq.s32.totalorder %s29, 1
      %p229 = scmp.ne.s32.totalorder %s224, %s226
      %p230 = scmp.eq.s32.totalorder %s29, 0
      %p231 = por %p229, %p230
      %p232 = scmp.ne.s32.totalorder %s224, %s226
      %p233 = scmp.eq.s32.totalorder %s34, 1
      %p234 = por %p232, %p233
      %p235 = scmp.ne.s32.totalorder %s226, %s227
      %p236 = scmp.eq.s32.totalorder %s34, 0
      %p237 = por %p235, %p236
      %p238 = scmp.ne.s32.totalorder %s226, %s227
      %p239 = scmp.eq.s32.totalorder %s35, 1
      %p240 = por %p238, %p239
      %p242 = scmp.ne.s32.totalorder %s227, %s241
      %p243 = scmp.eq.s32.totalorder %s35, 0
      %p244 = por %p242, %p243
      %s246 = sadd.s32 %s245, 1
      %p249 = scmp.eq.s32.totalorder %s29, 1
      %p250 = scmp.ne.s32.totalorder %s245, %s247
      %p251 = scmp.eq.s32.totalorder %s29, 0
      %p252 = por %p250, %p251
      %p253 = scmp.ne.s32.totalorder %s245, %s247
      %p254 = scmp.eq.s32.totalorder %s34, 1
      %p255 = por %p253, %p254
      %p256 = scmp.ne.s32.totalorder %s247, %s248
      %p257 = scmp.eq.s32.totalorder %s34, 0
      %p258 = por %p256, %p257
      %p259 = scmp.ne.s32.totalorder %s247, %s248
      %p260 = scmp.eq.s32.totalorder %s35, 1
      %p261 = por %p259, %p260
      %p263 = scmp.ne.s32.totalorder %s248, %s262
      %p264 = scmp.eq.s32.totalorder %s35, 0
      %p265 = por %p263, %p264
      %s267 = sadd.s32 %s266, 1
      %p270 = scmp.eq.s32.totalorder %s29, 1
      %p271 = scmp.ne.s32.totalorder %s266, %s268
      %p272 = scmp.eq.s32.totalorder %s29, 0
      %p273 = por %p271, %p272
      %p274 = scmp.ne.s32.totalorder %s266, %s268
      %p275 = scmp.eq.s32.totalorder %s34, 1
      %p276 = por %p274, %p275
      %p277 = scmp.ne.s32.totalorder %s268, %s269
      %p278 = scmp.eq.s32.totalorder %s34, 0
      %p279 = por %p277, %p278
      %p280 = scmp.ne.s32.totalorder %s268, %s269
      %p281 = scmp.eq.s32.totalorder %s35, 1
      %p282 = por %p280, %p281
      %p284 = scmp.ne.s32.totalorder %s269, %s283
      %p285 = scmp.eq.s32.totalorder %s35, 0
      %p286 = por %p284, %p285
      %s288 = sadd.s32 %s287, 1
      %p291 = scmp.eq.s32.totalorder %s29, 1
      %p292 = scmp.ne.s32.totalorder %s287, %s289
      %p293 = scmp.eq.s32.totalorder %s29, 0
      %p294 = por %p292, %p293
      %p295 = scmp.ne.s32.totalorder %s287, %s289
      %p296 = scmp.eq.s32.totalorder %s34, 1
      %p297 = por %p295, %p296
      %p298 = scmp.ne.s32.totalorder %s289, %s290
      %p299 = scmp.eq.s32.totalorder %s34, 0
      %p300 = por %p298, %p299
      %p301 = scmp.ne.s32.totalorder %s289, %s290
      %p302 = scmp.eq.s32.totalorder %s35, 1
      %p303 = por %p301, %p302
      %p305 = scmp.ne.s32.totalorder %s290, %s304
      %p306 = scmp.eq.s32.totalorder %s35, 0
      %p307 = por %p305, %p306
      %s309 = sadd.s32 %s308, 1
      %p312 = scmp.eq.s32.totalorder %s29, 1
      %p313 = scmp.ne.s32.totalorder %s308, %s310
      %p314 = scmp.eq.s32.totalorder %s29, 0
      %p315 = por %p313, %p314
      %p316 = scmp.ne.s32.totalorder %s308, %s310
      %p317 = scmp.eq.s32.totalorder %s34, 1
      %p318 = por %p316, %p317
      %p319 = scmp.ne.s32.totalorder %s310, %s311
      %p320 = scmp.eq.s32.totalorder %s34, 0
      %p321 = por %p319, %p320
      %p322 = scmp.ne.s32.totalorder %s310, %s311
      %p323 = scmp.eq.s32.totalorder %s35, 1
      %p324 = por %p322, %p323
      %p326 = scmp.ne.s32.totalorder %s311, %s325
      %p327 = scmp.eq.s32.totalorder %s35, 0
      %p328 = por %p326, %p327
      %s329 = ssub.s32 %s36, %s55
      %s330 = ssub.s32 %s37, %s51
      %s331 = sor.u32 %s329, %s330
      %p332 = scmp.eq.s32.totalorder %s331, 0
      %s334 = sadd.s32 %s333, 1
      %s335 = scalar_select %p332, %s333, %s334
      %p338 = pneg %p332
      %p339 = scmp.eq.s32.totalorder %s29, 1
      %p340 = por %p338, %p339
      %p341 = scmp.ne.s32.totalorder %s333, %s336
      %p342 = scmp.eq.s32.totalorder %s29, 0
      %p343 = por %p341, %p342
      %p344 = scmp.ne.s32.totalorder %s333, %s336
      %p345 = scmp.eq.s32.totalorder %s34, 1
      %p346 = por %p344, %p345
      %p347 = scmp.ne.s32.totalorder %s336, %s337
      %p348 = scmp.eq.s32.totalorder %s34, 0
      %p349 = por %p347, %p348
      %p350 = scmp.ne.s32.totalorder %s336, %s337
      %p351 = scmp.eq.s32.totalorder %s35, 1
      %p352 = por %p350, %p351
      %p354 = scmp.ne.s32.totalorder %s337, %s353
      %p355 = scmp.eq.s32.totalorder %s35, 0
      %p356 = por %p354, %p355
      %p357 = scmp.le.s32.totalorder 1, %s29
      %p358 = scmp.lt.s32.totalorder %s29, 3
      %p359 = pnand %p357, %p358
      %p360 = pneg %p359
      // Predicated region
      $region9: #{tpu_custom_call.1} parent=5 // pred_check
        _
      $region10: #{tpu_custom_call.1} parent=5 // pred_check_branch
        %362 = sbr.rel (%p359) target = $region12
      $region11: #{tpu_custom_call.1} parent=5 // pred_region
        %s363 = ssub.s32 %s29, 1
        // Predicated region
        $region13: #{tpu_custom_call.1} parent=11 // pred_check
          %p364 = pneg %p153
        $region14: #{tpu_custom_call.1} parent=11 // pred_check_branch
          %366 = sbr.rel (%p364) target = $region16
        $region15: #{tpu_custom_call.1} parent=11 // pred_region
          %s368 = ssub.s32 256, 256
          %369 = vsyncadd [#allocation13], %s368
          %s370 = sshll.u32 [#allocation12], 4
          %s371 = int_to_ptr.vmem [resolvable:$true] %s370
          %376 = dma.hbm_to_vmem [thread:$0]  %s3, 256, %s371, [#allocation13], 64, 64, 4
        $region16: #{tpu_custom_call.1} parent=11 // pred_fallthru
          _
        // Predicated region
        $region17: #{tpu_custom_call.1} parent=11 // pred_check
          %p377 = pneg %p174
        $region18: #{tpu_custom_call.1} parent=11 // pred_check_branch
          %379 = sbr.rel (%p377) target = $region20
        $region19: #{tpu_custom_call.1} parent=11 // pred_region
          _
        $region20: #{tpu_custom_call.1} parent=11 // pred_fallthru
          _
        // Predicated region
        $region21: #{tpu_custom_call.1} parent=11 // pred_check
          %p380 = pneg %p195
        $region22: #{tpu_custom_call.1} parent=11 // pred_check_branch
          %382 = sbr.rel (%p380) target = $region24
        $region23: #{tpu_custom_call.1} parent=11 // pred_region
          _
        $region24: #{tpu_custom_call.1} parent=11 // pred_fallthru
          _
        // Predicated region
        $region25: #{tpu_custom_call.1} parent=11 // pred_check
          %p383 = pneg %p216
        $region26: #{tpu_custom_call.1} parent=11 // pred_check_branch
          %385 = sbr.rel (%p383) target = $region28
        $region27: #{tpu_custom_call.1} parent=11 // pred_region
          _
        $region28: #{tpu_custom_call.1} parent=11 // pred_fallthru
          _
        // Predicated region
        $region29: #{tpu_custom_call.1} parent=11 // pred_check
          %p386 = pneg %p237
        $region30: #{tpu_custom_call.1} parent=11 // pred_check_branch
          %388 = sbr.rel (%p386) target = $region32
        $region31: #{tpu_custom_call.1} parent=11 // pred_region
          %s390 = ssub.s32 256, 256
          %391 = vsyncadd [#allocation13], %s390
          %s392 = sshll.u32 [#allocation14], 4
          %s393 = int_to_ptr.vmem [resolvable:$true] %s392
          %398 = dma.hbm_to_vmem [thread:$0]  %s7, 256, %s393, [#allocation13], 64, 64, 4
        $region32: #{tpu_custom_call.1} parent=11 // pred_fallthru
          _
        // Predicated region
        $region33: #{tpu_custom_call.1} parent=11 // pred_check
          %p399 = pneg %p258
        $region34: #{tpu_custom_call.1} parent=11 // pred_check_branch
          %401 = sbr.rel (%p399) target = $region36
        $region35: #{tpu_custom_call.1} parent=11 // pred_region
          %s403 = ssub.s32 16, 16
          %404 = vsyncadd [#allocation16], %s403
          %s406 = sshll.u32 [#allocation15], 4
          %s407 = int_to_ptr.vmem [resolvable:$true] %s406
          %409 = dma.hbm_to_vmem [thread:$0]  %s8, 16, %s407, [#allocation16]
        $region36: #{tpu_custom_call.1} parent=11 // pred_fallthru
          _
        // Predicated region
        $region37: #{tpu_custom_call.1} parent=11 // pred_check
          %p410 = pneg %p279
        $region38: #{tpu_custom_call.1} parent=11 // pred_check_branch
          %412 = sbr.rel (%p410) target = $region40
        $region39: #{tpu_custom_call.1} parent=11 // pred_region
          _
        $region40: #{tpu_custom_call.1} parent=11 // pred_fallthru
          _
        // Predicated region
        $region41: #{tpu_custom_call.1} parent=11 // pred_check
          %p413 = pneg %p300
        $region42: #{tpu_custom_call.1} parent=11 // pred_check_branch
          %415 = sbr.rel (%p413) target = $region44
        $region43: #{tpu_custom_call.1} parent=11 // pred_region
          %s417 = ssub.s32 256, 256
          %418 = vsyncadd [#allocation16], %s417
          %s419 = sshll.u32 [#allocation17], 4
          %s420 = int_to_ptr.vmem [resolvable:$true] %s419
          %425 = dma.hbm_to_vmem [thread:$0]  %s10, 256, %s420, [#allocation16], 64, 64, 4
        $region44: #{tpu_custom_call.1} parent=11 // pred_fallthru
          _
        // Predicated region
        $region45: #{tpu_custom_call.1} parent=11 // pred_check
          %p426 = pneg %p321
        $region46: #{tpu_custom_call.1} parent=11 // pred_check_branch
          %428 = sbr.rel (%p426) target = $region48
        $region47: #{tpu_custom_call.1} parent=11 // pred_region
          _
        $region48: #{tpu_custom_call.1} parent=11 // pred_fallthru
          _
      $region12: #{tpu_custom_call.1} parent=5 // pred_fallthru
        _
      %p429 = scmp.lt.s32.totalorder %s29, 2
      // Predicated region
      $region49: #{tpu_custom_call.1} parent=5 // pred_check
        %p430 = pneg %p429
      $region50: #{tpu_custom_call.1} parent=5 // pred_check_branch
        %432 = sbr.rel (%p430) target = $region52
      $region51: #{tpu_custom_call.1} parent=5 // pred_region
        // Predicated region
        $region53: #{tpu_custom_call.1} parent=51 // pred_check
          %p433 = pneg %p70
        $region54: #{tpu_custom_call.1} parent=51 // pred_check_branch
          %435 = sbr.rel (%p433) target = $region56
        $region55: #{tpu_custom_call.1} parent=51 // pred_region
          %s436 = sand.u32 %s60, 1
          %s437 = scalar_lea.sflag [#allocation7], %s436
          %s438 = sand.u32 %s60, 1
          %s439 = smul.addr %s438, 8
          %s440 = scalar_lea.vmem [#allocation6], %s439
          %s442 = ssub.s32 128, 128
          %443 = vsyncadd %s437, %s442
          %s444 = sadd.s32 %s37, %s36
          %s445 = smul.addr %s444, 128
          %s446 = scalar_lea.hbm %s0, %s445
          %s448 = sshll.u32 %s440, 4
          %s449 = int_to_ptr.vmem [resolvable:$true] %s448
          %451 = dma.hbm_to_vmem [thread:$0]  %s446, 128, %s449, %s437
        $region56: #{tpu_custom_call.1} parent=51 // pred_fallthru
          _
        // Predicated region
        $region57: #{tpu_custom_call.1} parent=51 // pred_check
          %p452 = pneg %p98
        $region58: #{tpu_custom_call.1} parent=51 // pred_check_branch
          %454 = sbr.rel (%p452) target = $region60
        $region59: #{tpu_custom_call.1} parent=51 // pred_region
          %s455 = sand.u32 %s29, 1
          %s456 = scalar_lea.sflag [#allocation10], %s455
          %s457 = sand.u32 %s88, 1
          %s458 = smul.addr %s457, 8
          %s459 = scalar_lea.vmem [#allocation9], %s458
          %s461 = ssub.s32 128, 128
          %462 = vsyncadd %s456, %s461
          %s463 = sadd.s32 %s38, %s36
          %s464 = smul.addr %s463, 128
          %s465 = scalar_lea.hbm %s1, %s464
          %s467 = sshll.u32 %s459, 4
          %s468 = int_to_ptr.vmem [resolvable:$true] %s467
          %470 = dma.hbm_to_vmem [thread:$0]  %s465, 128, %s468, %s456
        $region60: #{tpu_custom_call.1} parent=51 // pred_fallthru
          _
        // Predicated region
        $region61: #{tpu_custom_call.1} parent=51 // pred_check
          %p471 = pneg %p126
        $region62: #{tpu_custom_call.1} parent=51 // pred_check_branch
          %473 = sbr.rel (%p471) target = $region64
        $region63: #{tpu_custom_call.1} parent=51 // pred_region
          %s474 = sand.u32 %s29, 1
          %s475 = scalar_lea.sflag [#allocation10], %s474
          %s476 = sand.u32 %s116, 1
          %s477 = smul.addr %s476, 8
          %s478 = scalar_lea.vmem [#allocation11], %s477
          %s480 = ssub.s32 128, 128
          %481 = vsyncadd %s475, %s480
          %s482 = sadd.s32 %s38, %s36
          %s483 = smul.addr %s482, 128
          %s484 = scalar_lea.hbm %s2, %s483
          %s486 = sshll.u32 %s478, 4
          %s487 = int_to_ptr.vmem [resolvable:$true] %s486
          %489 = dma.hbm_to_vmem [thread:$0]  %s484, 128, %s487, %s475
        $region64: #{tpu_custom_call.1} parent=51 // pred_fallthru
          _
      $region52: #{tpu_custom_call.1} parent=5 // pred_fallthru
        _
      %p490 = scmp.le.s32.totalorder 1, %s29
      %p491 = scmp.lt.s32.totalorder %s29, 3
      %p492 = pnand %p490, %p491
      %p493 = pneg %p492
      // Predicated region
      $region65: #{tpu_custom_call.1} parent=5 // pred_check
        _
      $region66: #{tpu_custom_call.1} parent=5 // pred_check_branch
        %495 = sbr.rel (%p492) target = $region68
      $region67: #{tpu_custom_call.1} parent=5 // pred_region
        %s496 = ssub.s32 %s29, 1
        %s497 = sand.u32 %s63, 1
        %s498 = scalar_lea.sflag [#allocation7], %s497
        %s499 = sand.u32 %s63, 1
        %s500 = smul.addr %s499, 8
        %s501 = scalar_lea.vmem [#allocation6], %s500
        // Predicated region
        $region69: #{tpu_custom_call.1} parent=67 // pred_check
          %p502 = pneg %p76
        $region70: #{tpu_custom_call.1} parent=67 // pred_check_branch
          %504 = sbr.rel (%p502) target = $region72
        $region71: #{tpu_custom_call.1} parent=67 // pred_region
          %505 = dma.done %s498, 128
        $region72: #{tpu_custom_call.1} parent=67 // pred_fallthru
          _
        %s506 = sand.u32 %s34, 1
        %s507 = scalar_lea.sflag [#allocation10], %s506
        %s508 = sand.u32 %s91, 1
        %s509 = smul.addr %s508, 8
        %s510 = scalar_lea.vmem [#allocation9], %s509
        // Predicated region
        $region73: #{tpu_custom_call.1} parent=67 // pred_check
          %p511 = pneg %p104
        $region74: #{tpu_custom_call.1} parent=67 // pred_check_branch
          %513 = sbr.rel (%p511) target = $region76
        $region75: #{tpu_custom_call.1} parent=67 // pred_region
          %514 = dma.done %s507, 128
        $region76: #{tpu_custom_call.1} parent=67 // pred_fallthru
          _
        %s515 = sand.u32 %s34, 1
        %s516 = scalar_lea.sflag [#allocation10], %s515
        %s517 = sand.u32 %s119, 1
        %s518 = smul.addr %s517, 8
        %s519 = scalar_lea.vmem [#allocation11], %s518
        // Predicated region
        $region77: #{tpu_custom_call.1} parent=67 // pred_check
          %p520 = pneg %p132
        $region78: #{tpu_custom_call.1} parent=67 // pred_check_branch
          %522 = sbr.rel (%p520) target = $region80
        $region79: #{tpu_custom_call.1} parent=67 // pred_region
          %523 = dma.done %s516, 128
        $region80: #{tpu_custom_call.1} parent=67 // pred_fallthru
          _
        // Predicated region
        $region81: #{tpu_custom_call.1} parent=67 // pred_check
          %p524 = pneg %p153
        $region82: #{tpu_custom_call.1} parent=67 // pred_check_branch
          %526 = sbr.rel (%p524) target = $region84
        $region83: #{tpu_custom_call.1} parent=67 // pred_region
          %527 = dma.done [#allocation13], 256
        $region84: #{tpu_custom_call.1} parent=67 // pred_fallthru
          _
        // Predicated region
        $region85: #{tpu_custom_call.1} parent=67 // pred_check
          %p528 = pneg %p237
        $region86: #{tpu_custom_call.1} parent=67 // pred_check_branch
          %530 = sbr.rel (%p528) target = $region88
        $region87: #{tpu_custom_call.1} parent=67 // pred_region
          %531 = dma.done [#allocation13], 256
        $region88: #{tpu_custom_call.1} parent=67 // pred_fallthru
          _
        // Predicated region
        $region89: #{tpu_custom_call.1} parent=67 // pred_check
          %p532 = pneg %p258
        $region90: #{tpu_custom_call.1} parent=67 // pred_check_branch
          %534 = sbr.rel (%p532) target = $region92
        $region91: #{tpu_custom_call.1} parent=67 // pred_region
          %535 = dma.done [#allocation16], 16
        $region92: #{tpu_custom_call.1} parent=67 // pred_fallthru
          _
        // Predicated region
        $region93: #{tpu_custom_call.1} parent=67 // pred_check
          %p536 = pneg %p300
        $region94: #{tpu_custom_call.1} parent=67 // pred_check_branch
          %538 = sbr.rel (%p536) target = $region96
        $region95: #{tpu_custom_call.1} parent=67 // pred_region
          %539 = dma.done [#allocation16], 256
        $region96: #{tpu_custom_call.1} parent=67 // pred_fallthru
          _
        %s540 = sand.u32 %s63, 1
        %s541 = scalar_lea.sflag [#allocation7], %s540
        %s542 = sand.u32 %s63, 1
        %s543 = smul.addr %s542, 8
        %s544 = scalar_lea.vmem [#allocation6], %s543
        %p545 = pneg %p76
        %p546 = pneg %p73
        %s547 = sand.u32 %s34, 1
        %s548 = scalar_lea.sflag [#allocation10], %s547
        %s549 = sand.u32 %s91, 1
        %s550 = smul.addr %s549, 8
        %s551 = scalar_lea.vmem [#allocation9], %s550
        %p552 = pneg %p104
        %p553 = pneg %p101
        %s554 = sand.u32 %s34, 1
        %s555 = scalar_lea.sflag [#allocation10], %s554
        %s556 = sand.u32 %s119, 1
        %s557 = smul.addr %s556, 8
        %s558 = scalar_lea.vmem [#allocation11], %s557
        %p559 = pneg %p132
        %p560 = pneg %p129
        %p561 = pneg %p153
        %p562 = pneg %p150
        %p563 = pneg %p174
        %p564 = pneg %p171
        %p565 = pneg %p195
        %p566 = pneg %p192
        %p567 = pneg %p216
        %p568 = pneg %p213
        %p569 = pneg %p237
        %p570 = pneg %p234
        %p571 = pneg %p258
        %p572 = pneg %p255
        %p573 = pneg %p279
        %p574 = pneg %p276
        %p575 = pneg %p300
        %p576 = pneg %p297
        %p577 = pneg %p321
        %p578 = pneg %p318
        %p579 = pneg %p349
        %p580 = pneg %p346
        %s581 = sand.u32 %s336, 1
        %s582 = scalar_lea.sflag [#allocation8], %s581
        %s583 = sand.u32 %s336, 1
        %s584 = smul.addr %s583, 8
        %s585 = scalar_lea.vmem [#allocation18], %s584
        %p587 = scmp.eq.s32.totalorder %s41, 0
        // Predicated region
        $region97: #{tpu_custom_call.1} parent=67 // pred_check
          %p588 = pneg %p587
        $region98: #{tpu_custom_call.1} parent=67 // pred_check_branch
          %590 = sbr.rel (%p588) target = $region100
        $region99: #{tpu_custom_call.1} parent=67 // pred_region
          %v591 = vld [vmem:[%s501] sm:$0xff]
          %v592 = vpack.c.bf16 %v591, %v591
          %v593 = vld [vmem:[#allocation12] sm:$0xf]
          %v594 = vld [vmem:[#allocation12 + $0x4] sm:$0xf]
          %v595 = vld [vmem:[#allocation12 + $0x8] sm:$0xf]
          %v596 = vld [vmem:[#allocation12 + $0xc] sm:$0xf]
          %v597 = vld [vmem:[%s4] sm:$0x1]
          %v599 = vlaneseq
          %v600 = vshrl.u32 %v599, 7
          %v601 = vsub.s32 0, %v600
          %v602 = vrot.slane %v597, %v601
          %v608 = vunpack.c.l.b16 %v593
          %v609 = vunpack.c.l.b16 %v594
          %v610 = vunpack.c.l.b16 %v595
          %v611 = vunpack.c.l.b16 %v596
          %v612 = vpack.c.b16 %v609, %v608
          %v613 = vpack.c.b16 %v611, %v610
          %vm616 = vcmask 261120
          %v618 = vsel %vm616, %v592, 0
          %620 = vmatprep.subr.bf16.mxu0 0
          %621 = vmatpush1.bf16.msra.mxu0 %v612
          %622 = vmatprep.subr.bf16.mxu0 0
          %623 = vmatpush1.bf16.msra.mxu0 %v613
          %624 = vmatprep.subr.bf16.mxu0 0
          %625 = vmatpush1.bf16.msra.mxu0 0
          %626 = vmatprep.subr.bf16.mxu0 0
          %627 = vmatpush1.bf16.msra.mxu0 0
          %628 = vmatprep.subr.bf16.mxu0 0
          %629 = vmatpush1.bf16.msra.mxu0 0
          %630 = vmatprep.subr.bf16.mxu0 0
          %631 = vmatpush1.bf16.msra.mxu0 0
          %632 = vmatprep.subr.bf16.mxu0 0
          %633 = vmatpush1.bf16.msra.mxu0 0
          %634 = vmatprep.subr.bf16.mxu0 0
          %635 = vmatpush1.bf16.msra.mxu0 0
          %636 = vmatprep.subr.bf16.mxu0 0
          %637 = vmatpush1.bf16.msra.mxu0 0
          %638 = vmatprep.subr.bf16.mxu0 0
          %639 = vmatpush1.bf16.msra.mxu0 0
          %640 = vmatprep.subr.bf16.mxu0 0
          %641 = vmatpush1.bf16.msra.mxu0 0
          %642 = vmatprep.subr.bf16.mxu0 0
          %643 = vmatpush1.bf16.msra.mxu0 0
          %644 = vmatprep.subr.bf16.mxu0 0
          %645 = vmatpush1.bf16.msra.mxu0 0
          %646 = vmatprep.subr.bf16.mxu0 0
          %647 = vmatpush1.bf16.msra.mxu0 0
          %648 = vmatprep.subr.bf16.mxu0 0
          %649 = vmatpush1.bf16.msra.mxu0 0
          %650 = vmatprep.subr.bf16.mxu0 0
          %651 = vmatpush1.bf16.msra.mxu0 0
          %652 = vmatprep.mubr.bf16.mxu0 0
          %653 = vmatmul.mubr.bf16.gmra.mrb[0].mxu0 %v618
          %v654 = vpop.f32.mrb[0].mxu0
          %v655 = vadd.f32 %v602, %v654
          %v656 = vpop.f32.mrb[0].mxu0
          %v657 = vpop.f32.mrb[0].mxu0
          %v658 = vpop.f32.mrb[0].mxu0
          %659 = vdwg.mxu0
          %660 = vst.msk [vmem:[#allocation2] sm:$0xff] %vm616, %v655
          %vm661 = vcmask 60416
          %662 = vst.msk [vmem:[#allocation3] sm:$0xf] %vm661, -inf
          %663 = vst.msk [vmem:[#allocation4] sm:$0xf] %vm661, 0.0
          %vm664 = vcmask 64512
          %665 = vst.msk [vmem:[#allocation5] sm:$0xff] %vm664, 0.0
          %666 = vst.msk [vmem:[#allocation5 + $0x8] sm:$0xff] %vm664, 0.0
          %667 = vst.msk [vmem:[#allocation5 + $0x10] sm:$0xff] %vm664, 0.0
          %668 = vst.msk [vmem:[#allocation5 + $0x18] sm:$0xff] %vm664, 0.0
        $region100: #{tpu_custom_call.1} parent=67 // pred_fallthru
          _
        %v669 = vld [vmem:[%s510] sm:$0xff]
        %v670 = vpack.c.bf16 %v669, %v669
        %v671 = vld [vmem:[%s519] sm:$0xff]
        %v672 = vpack.c.bf16 %v671, %v671
        %v673 = vld [vmem:[%s5] sm:$0xf]
        %v674 = vld [vmem:[%s5 + $0x4] sm:$0xf]
        %v675 = vld [vmem:[%s5 + $0x8] sm:$0xf]
        %v676 = vld [vmem:[%s5 + $0xc] sm:$0xf]
        %v677 = vld [vmem:[%s6] sm:$0x1]
        %v679 = vlaneseq
        %v680 = vshrl.u32 %v679, 7
        %v681 = vsub.s32 0, %v680
        %v682 = vrot.slane %v677, %v681
        %v688 = vunpack.c.l.b16 %v673
        %v689 = vunpack.c.l.b16 %v674
        %v690 = vunpack.c.l.b16 %v675
        %v691 = vunpack.c.l.b16 %v676
        %v692 = vpack.c.b16 %v689, %v688
        %v693 = vpack.c.b16 %v691, %v690
        %vm696 = vcmask 261120
        %v698 = vsel %vm696, %v670, 0
        %700 = vmatprep.subr.bf16.mxu0 0
        %701 = vmatpush1.bf16.msra.mxu0 %v692
        %702 = vmatprep.subr.bf16.mxu0 0
        %703 = vmatpush1.bf16.msra.mxu0 %v693
        %704 = vmatprep.subr.bf16.mxu0 0
        %705 = vmatpush1.bf16.msra.mxu0 0
        %706 = vmatprep.subr.bf16.mxu0 0
        %707 = vmatpush1.bf16.msra.mxu0 0
        %708 = vmatprep.subr.bf16.mxu0 0
        %709 = vmatpush1.bf16.msra.mxu0 0
        %710 = vmatprep.subr.bf16.mxu0 0
        %711 = vmatpush1.bf16.msra.mxu0 0
        %712 = vmatprep.subr.bf16.mxu0 0
        %713 = vmatpush1.bf16.msra.mxu0 0
        %714 = vmatprep.subr.bf16.mxu0 0
        %715 = vmatpush1.bf16.msra.mxu0 0
        %716 = vmatprep.subr.bf16.mxu0 0
        %717 = vmatpush1.bf16.msra.mxu0 0
        %718 = vmatprep.subr.bf16.mxu0 0
        %719 = vmatpush1.bf16.msra.mxu0 0
        %720 = vmatprep.subr.bf16.mxu0 0
        %721 = vmatpush1.bf16.msra.mxu0 0
        %722 = vmatprep.subr.bf16.mxu0 0
        %723 = vmatpush1.bf16.msra.mxu0 0
        %724 = vmatprep.subr.bf16.mxu0 0
        %725 = vmatpush1.bf16.msra.mxu0 0
        %726 = vmatprep.subr.bf16.mxu0 0
        %727 = vmatpush1.bf16.msra.mxu0 0
        %728 = vmatprep.subr.bf16.mxu0 0
        %729 = vmatpush1.bf16.msra.mxu0 0
        %730 = vmatprep.subr.bf16.mxu0 0
        %731 = vmatpush1.bf16.msra.mxu0 0
        %732 = vmatprep.mubr.bf16.mxu0 0
        %733 = vmatmul.mubr.bf16.gmra.mrb[0].mxu0 %v698
        %v734 = vpop.f32.mrb[0].mxu0
        %v735 = vadd.f32 %v682, %v734
        %v736 = vpop.f32.mrb[0].mxu0
        %v737 = vpop.f32.mrb[0].mxu0
        %v738 = vpop.f32.mrb[0].mxu0
        %739 = vdwg.mxu0
        %v740 = vld [vmem:[#allocation14] sm:$0xf]
        %v741 = vld [vmem:[#allocation14 + $0x4] sm:$0xf]
        %v742 = vld [vmem:[#allocation14 + $0x8] sm:$0xf]
        %v743 = vld [vmem:[#allocation14 + $0xc] sm:$0xf]
        %v744 = vld [vmem:[#allocation15] sm:$0x1]
        %v746 = vlaneseq
        %v747 = vshrl.u32 %v746, 7
        %v748 = vsub.s32 0, %v747
        %v749 = vrot.slane %v744, %v748
        %v755 = vunpack.c.l.b16 %v740
        %v756 = vunpack.c.l.b16 %v741
        %v757 = vunpack.c.l.b16 %v742
        %v758 = vunpack.c.l.b16 %v743
        %v759 = vpack.c.b16 %v756, %v755
        %v760 = vpack.c.b16 %v758, %v757
        %v764 = vsel %vm696, %v672, 0
        %766 = vmatprep.subr.bf16.mxu0 0
        %767 = vmatpush1.bf16.msra.mxu0 %v759
        %768 = vmatprep.subr.bf16.mxu0 0
        %769 = vmatpush1.bf16.msra.mxu0 %v760
        %770 = vmatprep.subr.bf16.mxu0 0
        %771 = vmatpush1.bf16.msra.mxu0 0
        %772 = vmatprep.subr.bf16.mxu0 0
        %773 = vmatpush1.bf16.msra.mxu0 0
        %774 = vmatprep.subr.bf16.mxu0 0
        %775 = vmatpush1.bf16.msra.mxu0 0
        %776 = vmatprep.subr.bf16.mxu0 0
        %777 = vmatpush1.bf16.msra.mxu0 0
        %778 = vmatprep.subr.bf16.mxu0 0
        %779 = vmatpush1.bf16.msra.mxu0 0
        %780 = vmatprep.subr.bf16.mxu0 0
        %781 = vmatpush1.bf16.msra.mxu0 0
        %782 = vmatprep.subr.bf16.mxu0 0
        %783 = vmatpush1.bf16.msra.mxu0 0
        %784 = vmatprep.subr.bf16.mxu0 0
        %785 = vmatpush1.bf16.msra.mxu0 0
        %786 = vmatprep.subr.bf16.mxu0 0
        %787 = vmatpush1.bf16.msra.mxu0 0
        %788 = vmatprep.subr.bf16.mxu0 0
        %789 = vmatpush1.bf16.msra.mxu0 0
        %790 = vmatprep.subr.bf16.mxu0 0
        %791 = vmatpush1.bf16.msra.mxu0 0
        %792 = vmatprep.subr.bf16.mxu0 0
        %793 = vmatpush1.bf16.msra.mxu0 0
        %794 = vmatprep.subr.bf16.mxu0 0
        %795 = vmatpush1.bf16.msra.mxu0 0
        %796 = vmatprep.subr.bf16.mxu0 0
        %797 = vmatpush1.bf16.msra.mxu0 0
        %798 = vmatprep.mubr.bf16.mxu0 0
        %799 = vmatmul.mubr.bf16.gmra.mrb[0].mxu0 %v764
        %v800 = vpop.f32.mrb[0].mxu0
        %v801 = vadd.f32 %v749, %v800
        %v802 = vpop.f32.mrb[0].mxu0
        %v803 = vpop.f32.mrb[0].mxu0
        %v804 = vpop.f32.mrb[0].mxu0
        %805 = vdwg.mxu0
        %v806 = vld [vmem:[#allocation2] sm:$0xff]
        %808 = vrot.lane.b32.xlu0 %v806, 120
        %v809 = vpop.permute.xlu0 %808
        %811 = vrot.lane.b32.xlu0 %v806, 112
        %v812 = vpop.permute.xlu0 %811
        %814 = vrot.lane.b32.xlu0 %v806, 104
        %v815 = vpop.permute.xlu0 %814
        %v817 = vcombine.low %v806, %v812
        %v818 = vcombine.high %v806, %v812
        %v820 = vunpack.c.l.s4 1983009808
        %v821 = vunpack.c.0.s8 %v820
        %v822 = vlaneseq
        %v823 = vshrl.u32 %v822, 7
        %v824 = vsub.s32 %v821, %v823
        %v825 = vrot.slane %v817, %v824
        %v827 = vunpack.c.l.s4 1983009808
        %v828 = vunpack.c.0.s8 %v827
        %v829 = vlaneseq
        %v830 = vshrl.u32 %v829, 7
        %v831 = vsub.s32 %v828, %v830
        %v832 = vrot.slane %v818, %v831
        %v833 = vcombine.low %v809, %v815
        %v834 = vcombine.high %v809, %v815
        %v836 = vunpack.c.l.s4 1983009808
        %v837 = vunpack.c.0.s8 %v836
        %v838 = vlaneseq
        %v839 = vshrl.u32 %v838, 7
        %v840 = vsub.s32 %v837, %v839
        %v841 = vrot.slane %v833, %v840
        %v843 = vunpack.c.l.s4 1983009808
        %v844 = vunpack.c.0.s8 %v843
        %v845 = vlaneseq
        %v846 = vshrl.u32 %v845, 7
        %v847 = vsub.s32 %v844, %v846
        %v848 = vrot.slane %v834, %v847
        %v849 = vcombine.low %v825, %v841
        %v850 = vcombine.high %v825, %v841
        %v852 = vunpack.c.l.s4 1934713408
        %v853 = vunpack.c.0.s8 %v852
        %v854 = vlaneseq
        %v855 = vshrl.u32 %v854, 7
        %v856 = vsub.s32 %v853, %v855
        %v857 = vrot.slane %v849, %v856
        %v859 = vunpack.c.l.s4 1934713408
        %v860 = vunpack.c.0.s8 %v859
        %v861 = vlaneseq
        %v862 = vshrl.u32 %v861, 7
        %v863 = vsub.s32 %v860, %v862
        %v864 = vrot.slane %v850, %v863
        %v865 = vcombine.low %v832, %v848
        %v866 = vcombine.high %v832, %v848
        %v868 = vunpack.c.l.s4 1934713408
        %v869 = vunpack.c.0.s8 %v868
        %v870 = vlaneseq
        %v871 = vshrl.u32 %v870, 7
        %v872 = vsub.s32 %v869, %v871
        %v873 = vrot.slane %v865, %v872
        %v875 = vunpack.c.l.s4 1934713408
        %v876 = vunpack.c.0.s8 %v875
        %v877 = vlaneseq
        %v878 = vshrl.u32 %v877, 7
        %v879 = vsub.s32 %v876, %v878
        %v880 = vrot.slane %v866, %v879
        %v881 = vcombine.high %v857, 0.0
        %v882 = vcombine.high %v864, 0.0
        %v883 = vcombine.high %v873, 0.0
        %v884 = vcombine.high %v880, 0.0
        %v885 = vcombine.low %v857, %v864
        %v887 = vunpack.c.l.s4 1983009808
        %v888 = vunpack.c.0.s8 %v887
        %v889 = vlaneseq
        %v890 = vshrl.u32 %v889, 7
        %v891 = vsub.s32 %v888, %v890
        %v892 = vrot.slane %v885, %v891
        %v893 = vcombine.low %v881, %v882
        %v895 = vunpack.c.l.s4 1983009808
        %v896 = vunpack.c.0.s8 %v895
        %v897 = vlaneseq
        %v898 = vshrl.u32 %v897, 7
        %v899 = vsub.s32 %v896, %v898
        %v900 = vrot.slane %v893, %v899
        %v901 = vcombine.low %v873, %v880
        %v903 = vunpack.c.l.s4 1983009808
        %v904 = vunpack.c.0.s8 %v903
        %v905 = vlaneseq
        %v906 = vshrl.u32 %v905, 7
        %v907 = vsub.s32 %v904, %v906
        %v908 = vrot.slane %v901, %v907
        %v909 = vcombine.low %v883, %v884
        %v911 = vunpack.c.l.s4 1983009808
        %v912 = vunpack.c.0.s8 %v911
        %v913 = vlaneseq
        %v914 = vshrl.u32 %v913, 7
        %v915 = vsub.s32 %v912, %v914
        %v916 = vrot.slane %v909, %v915
        %v917 = vcombine.low %v892, %v900
        %v918 = vcombine.high %v892, %v900
        %v920 = vunpack.c.l.s4 1934713408
        %v921 = vunpack.c.0.s8 %v920
        %v922 = vlaneseq
        %v923 = vshrl.u32 %v922, 7
        %v924 = vsub.s32 %v921, %v923
        %v925 = vrot.slane %v917, %v924
        %v927 = vunpack.c.l.s4 1934713408
        %v928 = vunpack.c.0.s8 %v927
        %v929 = vlaneseq
        %v930 = vshrl.u32 %v929, 7
        %v931 = vsub.s32 %v928, %v930
        %v932 = vrot.slane %v918, %v931
        %v933 = vcombine.low %v908, %v916
        %v934 = vcombine.high %v908, %v916
        %v936 = vunpack.c.l.s4 1934713408
        %v937 = vunpack.c.0.s8 %v936
        %v938 = vlaneseq
        %v939 = vshrl.u32 %v938, 7
        %v940 = vsub.s32 %v937, %v939
        %v941 = vrot.slane %v933, %v940
        %v943 = vunpack.c.l.s4 1934713408
        %v944 = vunpack.c.0.s8 %v943
        %v945 = vlaneseq
        %v946 = vshrl.u32 %v945, 7
        %v947 = vsub.s32 %v944, %v946
        %v948 = vrot.slane %v934, %v947
        %v949 = vcombine.low %v925, %v941
        %v950 = vcombine.high %v925, %v941
        %v951 = vcombine.low %v932, %v948
        %v952 = vcombine.high %v932, %v948
        %v953 = vpack.c.bf16 %v949, %v949
        %v954 = vpack.c.bf16 %v950, %v950
        %v955 = vpack.c.bf16 %v951, %v951
        %v956 = vpack.c.bf16 %v952, %v952
        %958 = vrot.lane.b32.xlu0 %v735, 120
        %v959 = vpop.permute.xlu0 %958
        %961 = vrot.lane.b32.xlu0 %v735, 112
        %v962 = vpop.permute.xlu0 %961
        %964 = vrot.lane.b32.xlu0 %v735, 104
        %v965 = vpop.permute.xlu0 %964
        %v967 = vcombine.low %v735, %v962
        %v968 = vcombine.high %v735, %v962
        %v970 = vunpack.c.l.s4 1983009808
        %v971 = vunpack.c.0.s8 %v970
        %v972 = vlaneseq
        %v973 = vshrl.u32 %v972, 7
        %v974 = vsub.s32 %v971, %v973
        %v975 = vrot.slane %v967, %v974
        %v977 = vunpack.c.l.s4 1983009808
        %v978 = vunpack.c.0.s8 %v977
        %v979 = vlaneseq
        %v980 = vshrl.u32 %v979, 7
        %v981 = vsub.s32 %v978, %v980
        %v982 = vrot.slane %v968, %v981
        %v983 = vcombine.low %v959, %v965
        %v984 = vcombine.high %v959, %v965
        %v986 = vunpack.c.l.s4 1983009808
        %v987 = vunpack.c.0.s8 %v986
        %v988 = vlaneseq
        %v989 = vshrl.u32 %v988, 7
        %v990 = vsub.s32 %v987, %v989
        %v991 = vrot.slane %v983, %v990
        %v993 = vunpack.c.l.s4 1983009808
        %v994 = vunpack.c.0.s8 %v993
        %v995 = vlaneseq
        %v996 = vshrl.u32 %v995, 7
        %v997 = vsub.s32 %v994, %v996
        %v998 = vrot.slane %v984, %v997
        %v999 = vcombine.low %v975, %v991
        %v1000 = vcombine.high %v975, %v991
        %v1002 = vunpack.c.l.s4 1934713408
        %v1003 = vunpack.c.0.s8 %v1002
        %v1004 = vlaneseq
        %v1005 = vshrl.u32 %v1004, 7
        %v1006 = vsub.s32 %v1003, %v1005
        %v1007 = vrot.slane %v999, %v1006
        %v1009 = vunpack.c.l.s4 1934713408
        %v1010 = vunpack.c.0.s8 %v1009
        %v1011 = vlaneseq
        %v1012 = vshrl.u32 %v1011, 7
        %v1013 = vsub.s32 %v1010, %v1012
        %v1014 = vrot.slane %v1000, %v1013
        %v1015 = vcombine.low %v982, %v998
        %v1016 = vcombine.high %v982, %v998
        %v1018 = vunpack.c.l.s4 1934713408
        %v1019 = vunpack.c.0.s8 %v1018
        %v1020 = vlaneseq
        %v1021 = vshrl.u32 %v1020, 7
        %v1022 = vsub.s32 %v1019, %v1021
        %v1023 = vrot.slane %v1015, %v1022
        %v1025 = vunpack.c.l.s4 1934713408
        %v1026 = vunpack.c.0.s8 %v1025
        %v1027 = vlaneseq
        %v1028 = vshrl.u32 %v1027, 7
        %v1029 = vsub.s32 %v1026, %v1028
        %v1030 = vrot.slane %v1016, %v1029
        %v1031 = vcombine.high %v1007, 0.0
        %v1032 = vcombine.high %v1014, 0.0
        %v1033 = vcombine.high %v1023, 0.0
        %v1034 = vcombine.high %v1030, 0.0
        %v1035 = vcombine.low %v1007, %v1014
        %v1037 = vunpack.c.l.s4 1983009808
        %v1038 = vunpack.c.0.s8 %v1037
        %v1039 = vlaneseq
        %v1040 = vshrl.u32 %v1039, 7
        %v1041 = vsub.s32 %v1038, %v1040
        %v1042 = vrot.slane %v1035, %v1041
        %v1043 = vcombine.low %v1031, %v1032
        %v1045 = vunpack.c.l.s4 1983009808
        %v1046 = vunpack.c.0.s8 %v1045
        %v1047 = vlaneseq
        %v1048 = vshrl.u32 %v1047, 7
        %v1049 = vsub.s32 %v1046, %v1048
        %v1050 = vrot.slane %v1043, %v1049
        %v1051 = vcombine.low %v1023, %v1030
        %v1053 = vunpack.c.l.s4 1983009808
        %v1054 = vunpack.c.0.s8 %v1053
        %v1055 = vlaneseq
        %v1056 = vshrl.u32 %v1055, 7
        %v1057 = vsub.s32 %v1054, %v1056
        %v1058 = vrot.slane %v1051, %v1057
        %v1059 = vcombine.low %v1033, %v1034
        %v1061 = vunpack.c.l.s4 1983009808
        %v1062 = vunpack.c.0.s8 %v1061
        %v1063 = vlaneseq
        %v1064 = vshrl.u32 %v1063, 7
        %v1065 = vsub.s32 %v1062, %v1064
        %v1066 = vrot.slane %v1059, %v1065
        %v1067 = vcombine.low %v1042, %v1050
        %v1068 = vcombine.high %v1042, %v1050
        %v1070 = vunpack.c.l.s4 1934713408
        %v1071 = vunpack.c.0.s8 %v1070
        %v1072 = vlaneseq
        %v1073 = vshrl.u32 %v1072, 7
        %v1074 = vsub.s32 %v1071, %v1073
        %v1075 = vrot.slane %v1067, %v1074
        %v1077 = vunpack.c.l.s4 1934713408
        %v1078 = vunpack.c.0.s8 %v1077
        %v1079 = vlaneseq
        %v1080 = vshrl.u32 %v1079, 7
        %v1081 = vsub.s32 %v1078, %v1080
        %v1082 = vrot.slane %v1068, %v1081
        %v1083 = vcombine.low %v1058, %v1066
        %v1084 = vcombine.high %v1058, %v1066
        %v1086 = vunpack.c.l.s4 1934713408
        %v1087 = vunpack.c.0.s8 %v1086
        %v1088 = vlaneseq
        %v1089 = vshrl.u32 %v1088, 7
        %v1090 = vsub.s32 %v1087, %v1089
        %v1091 = vrot.slane %v1083, %v1090
        %v1093 = vunpack.c.l.s4 1934713408
        %v1094 = vunpack.c.0.s8 %v1093
        %v1095 = vlaneseq
        %v1096 = vshrl.u32 %v1095, 7
        %v1097 = vsub.s32 %v1094, %v1096
        %v1098 = vrot.slane %v1084, %v1097
        %v1099 = vcombine.low %v1075, %v1091
        %v1100 = vcombine.high %v1075, %v1091
        %v1101 = vcombine.low %v1082, %v1098
        %v1102 = vcombine.high %v1082, %v1098
        %v1103 = vpack.c.bf16 %v1099, %v1099
        %v1104 = vpack.c.bf16 %v1100, %v1100
        %v1105 = vpack.c.bf16 %v1101, %v1101
        %v1106 = vpack.c.bf16 %v1102, %v1102
        %1108 = vrot.lane.b32.xlu0 %v801, 120
        %v1109 = vpop.permute.xlu0 %1108
        %1111 = vrot.lane.b32.xlu0 %v801, 112
        %v1112 = vpop.permute.xlu0 %1111
        %1114 = vrot.lane.b32.xlu0 %v801, 104
        %v1115 = vpop.permute.xlu0 %1114
        %v1117 = vcombine.low %v801, %v1112
        %v1118 = vcombine.high %v801, %v1112
        %v1120 = vunpack.c.l.s4 1983009808
        %v1121 = vunpack.c.0.s8 %v1120
        %v1122 = vlaneseq
        %v1123 = vshrl.u32 %v1122, 7
        %v1124 = vsub.s32 %v1121, %v1123
        %v1125 = vrot.slane %v1117, %v1124
        %v1127 = vunpack.c.l.s4 1983009808
        %v1128 = vunpack.c.0.s8 %v1127
        %v1129 = vlaneseq
        %v1130 = vshrl.u32 %v1129, 7
        %v1131 = vsub.s32 %v1128, %v1130
        %v1132 = vrot.slane %v1118, %v1131
        %v1133 = vcombine.low %v1109, %v1115
        %v1134 = vcombine.high %v1109, %v1115
        %v1136 = vunpack.c.l.s4 1983009808
        %v1137 = vunpack.c.0.s8 %v1136
        %v1138 = vlaneseq
        %v1139 = vshrl.u32 %v1138, 7
        %v1140 = vsub.s32 %v1137, %v1139
        %v1141 = vrot.slane %v1133, %v1140
        %v1143 = vunpack.c.l.s4 1983009808
        %v1144 = vunpack.c.0.s8 %v1143
        %v1145 = vlaneseq
        %v1146 = vshrl.u32 %v1145, 7
        %v1147 = vsub.s32 %v1144, %v1146
        %v1148 = vrot.slane %v1134, %v1147
        %v1149 = vcombine.low %v1125, %v1141
        %v1150 = vcombine.high %v1125, %v1141
        %v1152 = vunpack.c.l.s4 1934713408
        %v1153 = vunpack.c.0.s8 %v1152
        %v1154 = vlaneseq
        %v1155 = vshrl.u32 %v1154, 7
        %v1156 = vsub.s32 %v1153, %v1155
        %v1157 = vrot.slane %v1149, %v1156
        %v1159 = vunpack.c.l.s4 1934713408
        %v1160 = vunpack.c.0.s8 %v1159
        %v1161 = vlaneseq
        %v1162 = vshrl.u32 %v1161, 7
        %v1163 = vsub.s32 %v1160, %v1162
        %v1164 = vrot.slane %v1150, %v1163
        %v1165 = vcombine.low %v1132, %v1148
        %v1166 = vcombine.high %v1132, %v1148
        %v1168 = vunpack.c.l.s4 1934713408
        %v1169 = vunpack.c.0.s8 %v1168
        %v1170 = vlaneseq
        %v1171 = vshrl.u32 %v1170, 7
        %v1172 = vsub.s32 %v1169, %v1171
        %v1173 = vrot.slane %v1165, %v1172
        %v1175 = vunpack.c.l.s4 1934713408
        %v1176 = vunpack.c.0.s8 %v1175
        %v1177 = vlaneseq
        %v1178 = vshrl.u32 %v1177, 7
        %v1179 = vsub.s32 %v1176, %v1178
        %v1180 = vrot.slane %v1166, %v1179
        %v1181 = vcombine.high %v1157, 0.0
        %v1182 = vcombine.high %v1164, 0.0
        %v1183 = vcombine.high %v1173, 0.0
        %v1184 = vcombine.high %v1180, 0.0
        %v1185 = vcombine.low %v1157, %v1164
        %v1187 = vunpack.c.l.s4 1983009808
        %v1188 = vunpack.c.0.s8 %v1187
        %v1189 = vlaneseq
        %v1190 = vshrl.u32 %v1189, 7
        %v1191 = vsub.s32 %v1188, %v1190
        %v1192 = vrot.slane %v1185, %v1191
        %v1193 = vcombine.low %v1181, %v1182
        %v1195 = vunpack.c.l.s4 1983009808
        %v1196 = vunpack.c.0.s8 %v1195
        %v1197 = vlaneseq
        %v1198 = vshrl.u32 %v1197, 7
        %v1199 = vsub.s32 %v1196, %v1198
        %v1200 = vrot.slane %v1193, %v1199
        %v1201 = vcombine.low %v1173, %v1180
        %v1203 = vunpack.c.l.s4 1983009808
        %v1204 = vunpack.c.0.s8 %v1203
        %v1205 = vlaneseq
        %v1206 = vshrl.u32 %v1205, 7
        %v1207 = vsub.s32 %v1204, %v1206
        %v1208 = vrot.slane %v1201, %v1207
        %v1209 = vcombine.low %v1183, %v1184
        %v1211 = vunpack.c.l.s4 1983009808
        %v1212 = vunpack.c.0.s8 %v1211
        %v1213 = vlaneseq
        %v1214 = vshrl.u32 %v1213, 7
        %v1215 = vsub.s32 %v1212, %v1214
        %v1216 = vrot.slane %v1209, %v1215
        %v1217 = vcombine.low %v1192, %v1200
        %v1218 = vcombine.high %v1192, %v1200
        %v1220 = vunpack.c.l.s4 1934713408
        %v1221 = vunpack.c.0.s8 %v1220
        %v1222 = vlaneseq
        %v1223 = vshrl.u32 %v1222, 7
        %v1224 = vsub.s32 %v1221, %v1223
        %v1225 = vrot.slane %v1217, %v1224
        %v1227 = vunpack.c.l.s4 1934713408
        %v1228 = vunpack.c.0.s8 %v1227
        %v1229 = vlaneseq
        %v1230 = vshrl.u32 %v1229, 7
        %v1231 = vsub.s32 %v1228, %v1230
        %v1232 = vrot.slane %v1218, %v1231
        %v1233 = vcombine.low %v1208, %v1216
        %v1234 = vcombine.high %v1208, %v1216
        %v1236 = vunpack.c.l.s4 1934713408
        %v1237 = vunpack.c.0.s8 %v1236
        %v1238 = vlaneseq
        %v1239 = vshrl.u32 %v1238, 7
        %v1240 = vsub.s32 %v1237, %v1239
        %v1241 = vrot.slane %v1233, %v1240
        %v1243 = vunpack.c.l.s4 1934713408
        %v1244 = vunpack.c.0.s8 %v1243
        %v1245 = vlaneseq
        %v1246 = vshrl.u32 %v1245, 7
        %v1247 = vsub.s32 %v1244, %v1246
        %v1248 = vrot.slane %v1234, %v1247
        %v1249 = vcombine.low %v1225, %v1241
        %v1250 = vcombine.high %v1225, %v1241
        %v1251 = vcombine.low %v1232, %v1248
        %v1252 = vcombine.high %v1232, %v1248
        %v1253 = vpack.c.bf16 %v1249, %v1249
        %v1254 = vpack.c.bf16 %v1250, %v1250
        %v1255 = vpack.c.bf16 %v1251, %v1251
        %v1256 = vpack.c.bf16 %v1252, %v1252
        %vm1257 = vcmask 64512
        %v1259 = vsel %vm1257, %v953, 0
        %v1262 = vsel %vm1257, %v1103, 0
        %1264 = vmatprep.subr.bf16.mxu0 0
        %1265 = vmatpush1.bf16.xpose.msra.mxu0 %v1262
        %1266 = vmatprep.subr.bf16.mxu0 0
        %1267 = vmatpush1.bf16.xpose.msra.mxu0 0
        %1268 = vmatprep.subr.bf16.mxu0 0
        %1269 = vmatpush1.bf16.xpose.msra.mxu0 0
        %1270 = vmatprep.subr.bf16.mxu0 0
        %1271 = vmatpush1.bf16.xpose.msra.mxu0 0
        %1272 = vmatprep.subr.bf16.mxu0 0
        %1273 = vmatpush1.bf16.xpose.msra.mxu0 0
        %1274 = vmatprep.subr.bf16.mxu0 0
        %1275 = vmatpush1.bf16.xpose.msra.mxu0 0
        %1276 = vmatprep.subr.bf16.mxu0 0
        %1277 = vmatpush1.bf16.xpose.msra.mxu0 0
        %1278 = vmatprep.subr.bf16.mxu0 0
        %1279 = vmatpush1.bf16.xpose.msra.mxu0 0
        %1280 = vmatprep.subr.bf16.mxu0 0
        %1281 = vmatpush1.bf16.xpose.msra.mxu0 0
        %1282 = vmatprep.subr.bf16.mxu0 0
        %1283 = vmatpush1.bf16.xpose.msra.mxu0 0
        %1284 = vmatprep.subr.bf16.mxu0 0
        %1285 = vmatpush1.bf16.xpose.msra.mxu0 0
        %1286 = vmatprep.subr.bf16.mxu0 0
        %1287 = vmatpush1.bf16.xpose.msra.mxu0 0
        %1288 = vmatprep.subr.bf16.mxu0 0
        %1289 = vmatpush1.bf16.xpose.msra.mxu0 0
        %1290 = vmatprep.subr.bf16.mxu0 0
        %1291 = vmatpush1.bf16.xpose.msra.mxu0 0
        %1292 = vmatprep.subr.bf16.mxu0 0
        %1293 = vmatpush1.bf16.xpose.msra.mxu0 0
        %1294 = vmatprep.subr.bf16.mxu0 0
        %1295 = vmatpush1.bf16.xpose.msra.mxu0 0
        %1296 = vmatprep.mubr.bf16.mxu0 0
        %1297 = vmatmul.mubr.bf16.gmra.mrb[0].mxu0 %v1259
        %v1298 = vpop.f32.mrb[0].mxu0
        %v1299 = vadd.f32 0.0, %v1298
        %v1300 = vpop.f32.mrb[0].mxu0
        %v1301 = vpop.f32.mrb[0].mxu0
        %v1302 = vpop.f32.mrb[0].mxu0
        %1303 = vdwg.mxu0
        %v1305 = vsel %vm1257, %v954, 0
        %v1308 = vsel %vm1257, %v1104, 0
        %1310 = vmatprep.subr.bf16.mxu0 0
        %1311 = vmatpush1.bf16.xpose.msra.mxu0 %v1308
        %1312 = vmatprep.subr.bf16.mxu0 0
        %1313 = vmatpush1.bf16.xpose.msra.mxu0 0
        %1314 = vmatprep.subr.bf16.mxu0 0
        %1315 = vmatpush1.bf16.xpose.msra.mxu0 0
        %1316 = vmatprep.subr.bf16.mxu0 0
        %1317 = vmatpush1.bf16.xpose.msra.mxu0 0
        %1318 = vmatprep.subr.bf16.mxu0 0
        %1319 = vmatpush1.bf16.xpose.msra.mxu0 0
        %1320 = vmatprep.subr.bf16.mxu0 0
        %1321 = vmatpush1.bf16.xpose.msra.mxu0 0
        %1322 = vmatprep.subr.bf16.mxu0 0
        %1323 = vmatpush1.bf16.xpose.msra.mxu0 0
        %1324 = vmatprep.subr.bf16.mxu0 0
        %1325 = vmatpush1.bf16.xpose.msra.mxu0 0
        %1326 = vmatprep.subr.bf16.mxu0 0
        %1327 = vmatpush1.bf16.xpose.msra.mxu0 0
        %1328 = vmatprep.subr.bf16.mxu0 0
        %1329 = vmatpush1.bf16.xpose.msra.mxu0 0
        %1330 = vmatprep.subr.bf16.mxu0 0
        %1331 = vmatpush1.bf16.xpose.msra.mxu0 0
        %1332 = vmatprep.subr.bf16.mxu0 0
        %1333 = vmatpush1.bf16.xpose.msra.mxu0 0
        %1334 = vmatprep.subr.bf16.mxu0 0
        %1335 = vmatpush1.bf16.xpose.msra.mxu0 0
        %1336 = vmatprep.subr.bf16.mxu0 0
        %1337 = vmatpush1.bf16.xpose.msra.mxu0 0
        %1338 = vmatprep.subr.bf16.mxu0 0
        %1339 = vmatpush1.bf16.xpose.msra.mxu0 0
        %1340 = vmatprep.subr.bf16.mxu0 0
        %1341 = vmatpush1.bf16.xpose.msra.mxu0 0
        %1342 = vmatprep.mubr.bf16.mxu0 0
        %1343 = vmatmul.mubr.bf16.gmra.mrb[0].mxu0 %v1305
        %v1344 = vpop.f32.mrb[0].mxu0
        %v1345 = vadd.f32 0.0, %v1344
        %v1346 = vpop.f32.mrb[0].mxu0
        %v1347 = vpop.f32.mrb[0].mxu0
        %v1348 = vpop.f32.mrb[0].mxu0
        %1349 = vdwg.mxu0
        %v1351 = vsel %vm1257, %v955, 0
        %v1354 = vsel %vm1257, %v1105, 0
        %1356 = vmatprep.subr.bf16.mxu0 0
        %1357 = vmatpush1.bf16.xpose.msra.mxu0 %v1354
        %1358 = vmatprep.subr.bf16.mxu0 0
        %1359 = vmatpush1.bf16.xpose.msra.mxu0 0
        %1360 = vmatprep.subr.bf16.mxu0 0
        %1361 = vmatpush1.bf16.xpose.msra.mxu0 0
        %1362 = vmatprep.subr.bf16.mxu0 0
        %1363 = vmatpush1.bf16.xpose.msra.mxu0 0
        %1364 = vmatprep.subr.bf16.mxu0 0
        %1365 = vmatpush1.bf16.xpose.msra.mxu0 0
        %1366 = vmatprep.subr.bf16.mxu0 0
        %1367 = vmatpush1.bf16.xpose.msra.mxu0 0
        %1368 = vmatprep.subr.bf16.mxu0 0
        %1369 = vmatpush1.bf16.xpose.msra.mxu0 0
        %1370 = vmatprep.subr.bf16.mxu0 0
        %1371 = vmatpush1.bf16.xpose.msra.mxu0 0
        %1372 = vmatprep.subr.bf16.mxu0 0
        %1373 = vmatpush1.bf16.xpose.msra.mxu0 0
        %1374 = vmatprep.subr.bf16.mxu0 0
        %1375 = vmatpush1.bf16.xpose.msra.mxu0 0
        %1376 = vmatprep.subr.bf16.mxu0 0
        %1377 = vmatpush1.bf16.xpose.msra.mxu0 0
        %1378 = vmatprep.subr.bf16.mxu0 0
        %1379 = vmatpush1.bf16.xpose.msra.mxu0 0
        %1380 = vmatprep.subr.bf16.mxu0 0
        %1381 = vmatpush1.bf16.xpose.msra.mxu0 0
        %1382 = vmatprep.subr.bf16.mxu0 0
        %1383 = vmatpush1.bf16.xpose.msra.mxu0 0
        %1384 = vmatprep.subr.bf16.mxu0 0
        %1385 = vmatpush1.bf16.xpose.msra.mxu0 0
        %1386 = vmatprep.subr.bf16.mxu0 0
        %1387 = vmatpush1.bf16.xpose.msra.mxu0 0
        %1388 = vmatprep.mubr.bf16.mxu0 0
        %1389 = vmatmul.mubr.bf16.gmra.mrb[0].mxu0 %v1351
        %v1390 = vpop.f32.mrb[0].mxu0
        %v1391 = vadd.f32 0.0, %v1390
        %v1392 = vpop.f32.mrb[0].mxu0
        %v1393 = vpop.f32.mrb[0].mxu0
        %v1394 = vpop.f32.mrb[0].mxu0
        %1395 = vdwg.mxu0
        %v1397 = vsel %vm1257, %v956, 0
        %v1400 = vsel %vm1257, %v1106, 0
        %1402 = vmatprep.subr.bf16.mxu0 0
        %1403 = vmatpush1.bf16.xpose.msra.mxu0 %v1400
        %1404 = vmatprep.subr.bf16.mxu0 0
        %1405 = vmatpush1.bf16.xpose.msra.mxu0 0
        %1406 = vmatprep.subr.bf16.mxu0 0
        %1407 = vmatpush1.bf16.xpose.msra.mxu0 0
        %1408 = vmatprep.subr.bf16.mxu0 0
        %1409 = vmatpush1.bf16.xpose.msra.mxu0 0
        %1410 = vmatprep.subr.bf16.mxu0 0
        %1411 = vmatpush1.bf16.xpose.msra.mxu0 0
        %1412 = vmatprep.subr.bf16.mxu0 0
        %1413 = vmatpush1.bf16.xpose.msra.mxu0 0
        %1414 = vmatprep.subr.bf16.mxu0 0
        %1415 = vmatpush1.bf16.xpose.msra.mxu0 0
        %1416 = vmatprep.subr.bf16.mxu0 0
        %1417 = vmatpush1.bf16.xpose.msra.mxu0 0
        %1418 = vmatprep.subr.bf16.mxu0 0
        %1419 = vmatpush1.bf16.xpose.msra.mxu0 0
        %1420 = vmatprep.subr.bf16.mxu0 0
        %1421 = vmatpush1.bf16.xpose.msra.mxu0 0
        %1422 = vmatprep.subr.bf16.mxu0 0
        %1423 = vmatpush1.bf16.xpose.msra.mxu0 0
        %1424 = vmatprep.subr.bf16.mxu0 0
        %1425 = vmatpush1.bf16.xpose.msra.mxu0 0
        %1426 = vmatprep.subr.bf16.mxu0 0
        %1427 = vmatpush1.bf16.xpose.msra.mxu0 0
        %1428 = vmatprep.subr.bf16.mxu0 0
        %1429 = vmatpush1.bf16.xpose.msra.mxu0 0
        %1430 = vmatprep.subr.bf16.mxu0 0
        %1431 = vmatpush1.bf16.xpose.msra.mxu0 0
        %1432 = vmatprep.subr.bf16.mxu0 0
        %1433 = vmatpush1.bf16.xpose.msra.mxu0 0
        %1434 = vmatprep.mubr.bf16.mxu0 0
        %1435 = vmatmul.mubr.bf16.gmra.mrb[0].mxu0 %v1397
        %v1436 = vpop.f32.mrb[0].mxu0
        %v1437 = vadd.f32 0.0, %v1436
        %v1438 = vpop.f32.mrb[0].mxu0
        %v1439 = vpop.f32.mrb[0].mxu0
        %v1440 = vpop.f32.mrb[0].mxu0
        %1441 = vdwg.mxu0
        %v1442 = vld [vmem:[#allocation3] sm:$0xf]
        %v1443 = vsel %vm1257, %v1299, -inf
        %1444 = vmax.xlane.f32.xlu0 %v1443
        %v1445 = vpop.xlane.xlu0 %1444
        %v1446 = vsel %vm1257, %v1345, -inf
        %1447 = vmax.xlane.f32.xlu0 %v1446
        %v1448 = vpop.xlane.xlu0 %1447
        %v1449 = vsel %vm1257, %v1391, -inf
        %1450 = vmax.xlane.f32.xlu0 %v1449
        %v1451 = vpop.xlane.xlu0 %1450
        %v1452 = vsel %vm1257, %v1437, -inf
        %1453 = vmax.xlane.f32.xlu0 %v1452
        %v1454 = vpop.xlane.xlu0 %1453
        %v1459 = vlaneseq
        %v1460 = vand.u32 %v1459, 127
        %v1461 = vlaneseq
        %v1462 = vshrl.u32 %v1461, 7
        %v1463 = vsub.s32 %v1460, %v1462
        %v1464 = vrot.slane %v1445, %v1463
        %v1465 = vlaneseq
        %v1466 = vshrl.u32 %v1465, 7
        %v1467 = vsub.s32 %v1460, %v1466
        %v1468 = vrot.slane %v1448, %v1467
        %v1469 = vlaneseq
        %v1470 = vshrl.u32 %v1469, 7
        %v1471 = vsub.s32 %v1460, %v1470
        %v1472 = vrot.slane %v1451, %v1471
        %v1473 = vlaneseq
        %v1474 = vshrl.u32 %v1473, 7
        %v1475 = vsub.s32 %v1460, %v1474
        %v1476 = vrot.slane %v1454, %v1475
        %vm1477 = vcmask 1041409
        %v1478 = vsel %vm1477, %v1468, %v1464
        %vm1479 = vcmask 1042434
        %v1480 = vsel %vm1479, %v1472, %v1478
        %vm1481 = vcmask 1043459
        %v1482 = vsel %vm1481, %v1476, %v1480
        %v1484 = vmax.f32 %v1442, %v1482
        %v1485 = vsub.f32 %v1442, %v1484
        %v1486 = vmul.f32 %v1485, 1.442695
        %v1487 = vpow.pop %v1486
        %v1488 = vlaneseq
        %v1489 = vshrl.u32 %v1488, 7
        %v1490 = vsub.s32 0, %v1489
        %v1491 = vrot.slane %v1484, %v1490
        %1493 = vbcast.lane.b32.xlu0 %v1491, 256
        %v1494 = vpop.permute.xlu0 %1493
        %v1495 = vlaneseq
        %v1496 = vshrl.u32 %v1495, 7
        %v1497 = vsub.s32 1, %v1496
        %v1498 = vrot.slane %v1484, %v1497
        %1500 = vbcast.lane.b32.xlu0 %v1498, 256
        %v1501 = vpop.permute.xlu0 %1500
        %v1502 = vlaneseq
        %v1503 = vshrl.u32 %v1502, 7
        %v1504 = vsub.s32 2, %v1503
        %v1505 = vrot.slane %v1484, %v1504
        %1507 = vbcast.lane.b32.xlu0 %v1505, 256
        %v1508 = vpop.permute.xlu0 %1507
        %v1509 = vlaneseq
        %v1510 = vshrl.u32 %v1509, 7
        %v1511 = vsub.s32 3, %v1510
        %v1512 = vrot.slane %v1484, %v1511
        %1514 = vbcast.lane.b32.xlu0 %v1512, 256
        %v1515 = vpop.permute.xlu0 %1514
        %v1516 = vsub.f32 %v1299, %v1494
        %v1517 = vsub.f32 %v1345, %v1501
        %v1518 = vsub.f32 %v1391, %v1508
        %v1519 = vsub.f32 %v1437, %v1515
        %v1520 = vmul.f32 %v1516, 1.442695
        %v1521 = vpow.pop %v1520
        %v1522 = vmul.f32 %v1517, 1.442695
        %v1523 = vpow.pop %v1522
        %v1524 = vmul.f32 %v1518, 1.442695
        %v1525 = vpow.pop %v1524
        %v1526 = vmul.f32 %v1519, 1.442695
        %v1527 = vpow.pop %v1526
        %v1528 = vld [vmem:[#allocation4] sm:$0xf]
        %v1529 = vmul.f32 %v1487, %v1528
        %v1530 = vsel %vm1257, %v1521, 0.0
        %1531 = vadd.xlane.f32.xlu0 %v1530
        %v1532 = vpop.xlane.xlu0 %1531
        %v1533 = vsel %vm1257, %v1523, 0.0
        %1534 = vadd.xlane.f32.xlu0 %v1533
        %v1535 = vpop.xlane.xlu0 %1534
        %v1536 = vsel %vm1257, %v1525, 0.0
        %1537 = vadd.xlane.f32.xlu0 %v1536
        %v1538 = vpop.xlane.xlu0 %1537
        %v1539 = vsel %vm1257, %v1527, 0.0
        %1540 = vadd.xlane.f32.xlu0 %v1539
        %v1541 = vpop.xlane.xlu0 %1540
        %v1546 = vlaneseq
        %v1547 = vshrl.u32 %v1546, 7
        %v1548 = vsub.s32 %v1460, %v1547
        %v1549 = vrot.slane %v1532, %v1548
        %v1550 = vlaneseq
        %v1551 = vshrl.u32 %v1550, 7
        %v1552 = vsub.s32 %v1460, %v1551
        %v1553 = vrot.slane %v1535, %v1552
        %v1554 = vlaneseq
        %v1555 = vshrl.u32 %v1554, 7
        %v1556 = vsub.s32 %v1460, %v1555
        %v1557 = vrot.slane %v1538, %v1556
        %v1558 = vlaneseq
        %v1559 = vshrl.u32 %v1558, 7
        %v1560 = vsub.s32 %v1460, %v1559
        %v1561 = vrot.slane %v1541, %v1560
        %v1562 = vsel %vm1477, %v1553, %v1549
        %v1563 = vsel %vm1479, %v1557, %v1562
        %v1564 = vsel %vm1481, %v1561, %v1563
        %v1566 = vadd.f32 %v1529, %v1564
        %vm1567 = vcmask 60416
        %1568 = vst.msk [vmem:[#allocation4] sm:$0xf] %vm1567, %v1566
        %v1569 = vpack.c.bf16 %v1521, %v1521
        %v1570 = vpack.c.bf16 %v1523, %v1523
        %v1571 = vpack.c.bf16 %v1525, %v1525
        %v1572 = vpack.c.bf16 %v1527, %v1527
        %v1574 = vsel %vm1257, %v1569, 0
        %vm1576 = vcmask 1043456
        %v1578 = vsel %vm1576, %v1253, 0
        %1580 = vmatprep.subr.bf16.mxu0 0
        %1581 = vmatpush1.bf16.msra.mxu0 %v1578
        %1582 = vmatprep.subr.bf16.mxu0 0
        %1583 = vmatpush1.bf16.msra.mxu0 0
        %1584 = vmatprep.subr.bf16.mxu0 0
        %1585 = vmatpush1.bf16.msra.mxu0 0
        %1586 = vmatprep.subr.bf16.mxu0 0
        %1587 = vmatpush1.bf16.msra.mxu0 0
        %1588 = vmatprep.subr.bf16.mxu0 0
        %1589 = vmatpush1.bf16.msra.mxu0 0
        %1590 = vmatprep.subr.bf16.mxu0 0
        %1591 = vmatpush1.bf16.msra.mxu0 0
        %1592 = vmatprep.subr.bf16.mxu0 0
        %1593 = vmatpush1.bf16.msra.mxu0 0
        %1594 = vmatprep.subr.bf16.mxu0 0
        %1595 = vmatpush1.bf16.msra.mxu0 0
        %1596 = vmatprep.subr.bf16.mxu0 0
        %1597 = vmatpush1.bf16.msra.mxu0 0
        %1598 = vmatprep.subr.bf16.mxu0 0
        %1599 = vmatpush1.bf16.msra.mxu0 0
        %1600 = vmatprep.subr.bf16.mxu0 0
        %1601 = vmatpush1.bf16.msra.mxu0 0
        %1602 = vmatprep.subr.bf16.mxu0 0
        %1603 = vmatpush1.bf16.msra.mxu0 0
        %1604 = vmatprep.subr.bf16.mxu0 0
        %1605 = vmatpush1.bf16.msra.mxu0 0
        %1606 = vmatprep.subr.bf16.mxu0 0
        %1607 = vmatpush1.bf16.msra.mxu0 0
        %1608 = vmatprep.subr.bf16.mxu0 0
        %1609 = vmatpush1.bf16.msra.mxu0 0
        %1610 = vmatprep.subr.bf16.mxu0 0
        %1611 = vmatpush1.bf16.msra.mxu0 0
        %1612 = vmatprep.mubr.bf16.mxu0 0
        %1613 = vmatmul.mubr.bf16.gmra.mrb[0].mxu0 %v1574
        %v1614 = vpop.f32.mrb[0].mxu0
        %v1615 = vadd.f32 0.0, %v1614
        %v1616 = vpop.f32.mrb[0].mxu0
        %v1617 = vpop.f32.mrb[0].mxu0
        %v1618 = vpop.f32.mrb[0].mxu0
        %1619 = vdwg.mxu0
        %v1621 = vsel %vm1257, %v1570, 0
        %v1624 = vsel %vm1576, %v1254, 0
        %1626 = vmatprep.subr.bf16.mxu0 0
        %1627 = vmatpush1.bf16.msra.mxu0 %v1624
        %1628 = vmatprep.subr.bf16.mxu0 0
        %1629 = vmatpush1.bf16.msra.mxu0 0
        %1630 = vmatprep.subr.bf16.mxu0 0
        %1631 = vmatpush1.bf16.msra.mxu0 0
        %1632 = vmatprep.subr.bf16.mxu0 0
        %1633 = vmatpush1.bf16.msra.mxu0 0
        %1634 = vmatprep.subr.bf16.mxu0 0
        %1635 = vmatpush1.bf16.msra.mxu0 0
        %1636 = vmatprep.subr.bf16.mxu0 0
        %1637 = vmatpush1.bf16.msra.mxu0 0
        %1638 = vmatprep.subr.bf16.mxu0 0
        %1639 = vmatpush1.bf16.msra.mxu0 0
        %1640 = vmatprep.subr.bf16.mxu0 0
        %1641 = vmatpush1.bf16.msra.mxu0 0
        %1642 = vmatprep.subr.bf16.mxu0 0
        %1643 = vmatpush1.bf16.msra.mxu0 0
        %1644 = vmatprep.subr.bf16.mxu0 0
        %1645 = vmatpush1.bf16.msra.mxu0 0
        %1646 = vmatprep.subr.bf16.mxu0 0
        %1647 = vmatpush1.bf16.msra.mxu0 0
        %1648 = vmatprep.subr.bf16.mxu0 0
        %1649 = vmatpush1.bf16.msra.mxu0 0
        %1650 = vmatprep.subr.bf16.mxu0 0
        %1651 = vmatpush1.bf16.msra.mxu0 0
        %1652 = vmatprep.subr.bf16.mxu0 0
        %1653 = vmatpush1.bf16.msra.mxu0 0
        %1654 = vmatprep.subr.bf16.mxu0 0
        %1655 = vmatpush1.bf16.msra.mxu0 0
        %1656 = vmatprep.subr.bf16.mxu0 0
        %1657 = vmatpush1.bf16.msra.mxu0 0
        %1658 = vmatprep.mubr.bf16.mxu0 0
        %1659 = vmatmul.mubr.bf16.gmra.mrb[0].mxu0 %v1621
        %v1660 = vpop.f32.mrb[0].mxu0
        %v1661 = vadd.f32 0.0, %v1660
        %v1662 = vpop.f32.mrb[0].mxu0
        %v1663 = vpop.f32.mrb[0].mxu0
        %v1664 = vpop.f32.mrb[0].mxu0
        %1665 = vdwg.mxu0
        %v1667 = vsel %vm1257, %v1571, 0
        %v1670 = vsel %vm1576, %v1255, 0
        %1672 = vmatprep.subr.bf16.mxu0 0
        %1673 = vmatpush1.bf16.msra.mxu0 %v1670
        %1674 = vmatprep.subr.bf16.mxu0 0
        %1675 = vmatpush1.bf16.msra.mxu0 0
        %1676 = vmatprep.subr.bf16.mxu0 0
        %1677 = vmatpush1.bf16.msra.mxu0 0
        %1678 = vmatprep.subr.bf16.mxu0 0
        %1679 = vmatpush1.bf16.msra.mxu0 0
        %1680 = vmatprep.subr.bf16.mxu0 0
        %1681 = vmatpush1.bf16.msra.mxu0 0
        %1682 = vmatprep.subr.bf16.mxu0 0
        %1683 = vmatpush1.bf16.msra.mxu0 0
        %1684 = vmatprep.subr.bf16.mxu0 0
        %1685 = vmatpush1.bf16.msra.mxu0 0
        %1686 = vmatprep.subr.bf16.mxu0 0
        %1687 = vmatpush1.bf16.msra.mxu0 0
        %1688 = vmatprep.subr.bf16.mxu0 0
        %1689 = vmatpush1.bf16.msra.mxu0 0
        %1690 = vmatprep.subr.bf16.mxu0 0
        %1691 = vmatpush1.bf16.msra.mxu0 0
        %1692 = vmatprep.subr.bf16.mxu0 0
        %1693 = vmatpush1.bf16.msra.mxu0 0
        %1694 = vmatprep.subr.bf16.mxu0 0
        %1695 = vmatpush1.bf16.msra.mxu0 0
        %1696 = vmatprep.subr.bf16.mxu0 0
        %1697 = vmatpush1.bf16.msra.mxu0 0
        %1698 = vmatprep.subr.bf16.mxu0 0
        %1699 = vmatpush1.bf16.msra.mxu0 0
        %1700 = vmatprep.subr.bf16.mxu0 0
        %1701 = vmatpush1.bf16.msra.mxu0 0
        %1702 = vmatprep.subr.bf16.mxu0 0
        %1703 = vmatpush1.bf16.msra.mxu0 0
        %1704 = vmatprep.mubr.bf16.mxu0 0
        %1705 = vmatmul.mubr.bf16.gmra.mrb[0].mxu0 %v1667
        %v1706 = vpop.f32.mrb[0].mxu0
        %v1707 = vadd.f32 0.0, %v1706
        %v1708 = vpop.f32.mrb[0].mxu0
        %v1709 = vpop.f32.mrb[0].mxu0
        %v1710 = vpop.f32.mrb[0].mxu0
        %1711 = vdwg.mxu0
        %v1713 = vsel %vm1257, %v1572, 0
        %v1716 = vsel %vm1576, %v1256, 0
        %1718 = vmatprep.subr.bf16.mxu0 0
        %1719 = vmatpush1.bf16.msra.mxu0 %v1716
        %1720 = vmatprep.subr.bf16.mxu0 0
        %1721 = vmatpush1.bf16.msra.mxu0 0
        %1722 = vmatprep.subr.bf16.mxu0 0
        %1723 = vmatpush1.bf16.msra.mxu0 0
        %1724 = vmatprep.subr.bf16.mxu0 0
        %1725 = vmatpush1.bf16.msra.mxu0 0
        %1726 = vmatprep.subr.bf16.mxu0 0
        %1727 = vmatpush1.bf16.msra.mxu0 0
        %1728 = vmatprep.subr.bf16.mxu0 0
        %1729 = vmatpush1.bf16.msra.mxu0 0
        %1730 = vmatprep.subr.bf16.mxu0 0
        %1731 = vmatpush1.bf16.msra.mxu0 0
        %1732 = vmatprep.subr.bf16.mxu0 0
        %1733 = vmatpush1.bf16.msra.mxu0 0
        %1734 = vmatprep.subr.bf16.mxu0 0
        %1735 = vmatpush1.bf16.msra.mxu0 0
        %1736 = vmatprep.subr.bf16.mxu0 0
        %1737 = vmatpush1.bf16.msra.mxu0 0
        %1738 = vmatprep.subr.bf16.mxu0 0
        %1739 = vmatpush1.bf16.msra.mxu0 0
        %1740 = vmatprep.subr.bf16.mxu0 0
        %1741 = vmatpush1.bf16.msra.mxu0 0
        %1742 = vmatprep.subr.bf16.mxu0 0
        %1743 = vmatpush1.bf16.msra.mxu0 0
        %1744 = vmatprep.subr.bf16.mxu0 0
        %1745 = vmatpush1.bf16.msra.mxu0 0
        %1746 = vmatprep.subr.bf16.mxu0 0
        %1747 = vmatpush1.bf16.msra.mxu0 0
        %1748 = vmatprep.subr.bf16.mxu0 0
        %1749 = vmatpush1.bf16.msra.mxu0 0
        %1750 = vmatprep.mubr.bf16.mxu0 0
        %1751 = vmatmul.mubr.bf16.gmra.mrb[0].mxu0 %v1713
        %v1752 = vpop.f32.mrb[0].mxu0
        %v1753 = vadd.f32 0.0, %v1752
        %v1754 = vpop.f32.mrb[0].mxu0
        %v1755 = vpop.f32.mrb[0].mxu0
        %v1756 = vpop.f32.mrb[0].mxu0
        %1757 = vdwg.mxu0
        %v1758 = vlaneseq
        %v1759 = vshrl.u32 %v1758, 7
        %v1760 = vsub.s32 0, %v1759
        %v1761 = vrot.slane %v1487, %v1760
        %1763 = vbcast.lane.b32.xlu0 %v1761, 256
        %v1764 = vpop.permute.xlu0 %1763
        %v1765 = vlaneseq
        %v1766 = vshrl.u32 %v1765, 7
        %v1767 = vsub.s32 1, %v1766
        %v1768 = vrot.slane %v1487, %v1767
        %1770 = vbcast.lane.b32.xlu0 %v1768, 256
        %v1771 = vpop.permute.xlu0 %1770
        %v1772 = vlaneseq
        %v1773 = vshrl.u32 %v1772, 7
        %v1774 = vsub.s32 2, %v1773
        %v1775 = vrot.slane %v1487, %v1774
        %1777 = vbcast.lane.b32.xlu0 %v1775, 256
        %v1778 = vpop.permute.xlu0 %1777
        %v1779 = vlaneseq
        %v1780 = vshrl.u32 %v1779, 7
        %v1781 = vsub.s32 3, %v1780
        %v1782 = vrot.slane %v1487, %v1781
        %1784 = vbcast.lane.b32.xlu0 %v1782, 256
        %v1785 = vpop.permute.xlu0 %1784
        %v1786 = vld [vmem:[#allocation5] sm:$0xff]
        %v1787 = vld [vmem:[#allocation5 + $0x8] sm:$0xff]
        %v1788 = vld [vmem:[#allocation5 + $0x10] sm:$0xff]
        %v1789 = vld [vmem:[#allocation5 + $0x18] sm:$0xff]
        %v1790 = vmul.f32 %v1764, %v1786
        %v1791 = vmul.f32 %v1771, %v1787
        %v1792 = vmul.f32 %v1778, %v1788
        %v1793 = vmul.f32 %v1785, %v1789
        %v1794 = vadd.f32 %v1790, %v1615
        %v1795 = vadd.f32 %v1791, %v1661
        %v1796 = vadd.f32 %v1792, %v1707
        %v1797 = vadd.f32 %v1793, %v1753
        %1798 = vst.msk [vmem:[#allocation5] sm:$0xff] %vm1257, %v1794
        %1799 = vst.msk [vmem:[#allocation5 + $0x8] sm:$0xff] %vm1257, %v1795
        %1800 = vst.msk [vmem:[#allocation5 + $0x10] sm:$0xff] %vm1257, %v1796
        %1801 = vst.msk [vmem:[#allocation5 + $0x18] sm:$0xff] %vm1257, %v1797
        %1802 = vst.msk [vmem:[#allocation3] sm:$0xf] %vm1567, %v1484
        // Predicated region
        $region101: #{tpu_custom_call.1} parent=67 // pred_check
          %p1803 = pneg %p587
        $region102: #{tpu_custom_call.1} parent=67 // pred_check_branch
          %1805 = sbr.rel (%p1803) target = $region104
        $region103: #{tpu_custom_call.1} parent=67 // pred_region
          %v1806 = vld [vmem:[#allocation4] sm:$0xf]
          %v1807 = vrcp.pop %v1806
          %v1808 = vld [vmem:[#allocation5] sm:$0xff]
          %v1809 = vld [vmem:[#allocation5 + $0x8] sm:$0xff]
          %v1810 = vld [vmem:[#allocation5 + $0x10] sm:$0xff]
          %v1811 = vld [vmem:[#allocation5 + $0x18] sm:$0xff]
          %v1812 = vlaneseq
          %v1813 = vshrl.u32 %v1812, 7
          %v1814 = vsub.s32 0, %v1813
          %v1815 = vrot.slane %v1807, %v1814
          %1817 = vbcast.lane.b32.xlu0 %v1815, 256
          %v1818 = vpop.permute.xlu0 %1817
          %v1819 = vlaneseq
          %v1820 = vshrl.u32 %v1819, 7
          %v1821 = vsub.s32 1, %v1820
          %v1822 = vrot.slane %v1807, %v1821
          %1824 = vbcast.lane.b32.xlu0 %v1822, 256
          %v1825 = vpop.permute.xlu0 %1824
          %v1826 = vlaneseq
          %v1827 = vshrl.u32 %v1826, 7
          %v1828 = vsub.s32 2, %v1827
          %v1829 = vrot.slane %v1807, %v1828
          %1831 = vbcast.lane.b32.xlu0 %v1829, 256
          %v1832 = vpop.permute.xlu0 %1831
          %v1833 = vlaneseq
          %v1834 = vshrl.u32 %v1833, 7
          %v1835 = vsub.s32 3, %v1834
          %v1836 = vrot.slane %v1807, %v1835
          %1838 = vbcast.lane.b32.xlu0 %v1836, 256
          %v1839 = vpop.permute.xlu0 %1838
          %v1840 = vmul.f32 %v1808, %v1818
          %v1841 = vmul.f32 %v1809, %v1825
          %v1842 = vmul.f32 %v1810, %v1832
          %v1843 = vmul.f32 %v1811, %v1839
          %v1844 = vpack.c.bf16 %v1840, %v1840
          %v1845 = vpack.c.bf16 %v1841, %v1841
          %v1846 = vpack.c.bf16 %v1842, %v1842
          %v1847 = vpack.c.bf16 %v1843, %v1843
          %v1848 = vld [vmem:[#allocation17] sm:$0xf]
          %v1849 = vld [vmem:[#allocation17 + $0x4] sm:$0xf]
          %v1850 = vld [vmem:[#allocation17 + $0x8] sm:$0xf]
          %v1851 = vld [vmem:[#allocation17 + $0xc] sm:$0xf]
          %v1853 = vsel %vm1257, %v1844, 0
          %v1856 = vsel %vm1576, %v1848, 0
          %1858 = vmatprep.subr.bf16.mxu0 0
          %1859 = vmatpush1.bf16.msra.mxu0 %v1856
          %1860 = vmatprep.subr.bf16.mxu0 0
          %1861 = vmatpush1.bf16.msra.mxu0 0
          %1862 = vmatprep.subr.bf16.mxu0 0
          %1863 = vmatpush1.bf16.msra.mxu0 0
          %1864 = vmatprep.subr.bf16.mxu0 0
          %1865 = vmatpush1.bf16.msra.mxu0 0
          %1866 = vmatprep.subr.bf16.mxu0 0
          %1867 = vmatpush1.bf16.msra.mxu0 0
          %1868 = vmatprep.subr.bf16.mxu0 0
          %1869 = vmatpush1.bf16.msra.mxu0 0
          %1870 = vmatprep.subr.bf16.mxu0 0
          %1871 = vmatpush1.bf16.msra.mxu0 0
          %1872 = vmatprep.subr.bf16.mxu0 0
          %1873 = vmatpush1.bf16.msra.mxu0 0
          %1874 = vmatprep.subr.bf16.mxu0 0
          %1875 = vmatpush1.bf16.msra.mxu0 0
          %1876 = vmatprep.subr.bf16.mxu0 0
          %1877 = vmatpush1.bf16.msra.mxu0 0
          %1878 = vmatprep.subr.bf16.mxu0 0
          %1879 = vmatpush1.bf16.msra.mxu0 0
          %1880 = vmatprep.subr.bf16.mxu0 0
          %1881 = vmatpush1.bf16.msra.mxu0 0
          %1882 = vmatprep.subr.bf16.mxu0 0
          %1883 = vmatpush1.bf16.msra.mxu0 0
          %1884 = vmatprep.subr.bf16.mxu0 0
          %1885 = vmatpush1.bf16.msra.mxu0 0
          %1886 = vmatprep.subr.bf16.mxu0 0
          %1887 = vmatpush1.bf16.msra.mxu0 0
          %1888 = vmatprep.subr.bf16.mxu0 0
          %1889 = vmatpush1.bf16.msra.mxu0 0
          %1890 = vmatprep.mubr.bf16.mxu0 0
          %1891 = vmatmul.mubr.bf16.gmra.mrb[0].mxu0 %v1853
          %v1892 = vpop.f32.mrb[0].mxu0
          %v1893 = vadd.f32 0.0, %v1892
          %v1894 = vpop.f32.mrb[0].mxu0
          %v1895 = vpop.f32.mrb[0].mxu0
          %v1896 = vpop.f32.mrb[0].mxu0
          %1897 = vdwg.mxu0
          %v1899 = vsel %vm1257, %v1845, 0
          %v1902 = vsel %vm1576, %v1849, 0
          %1904 = vmatprep.subr.bf16.mxu0 0
          %1905 = vmatpush1.bf16.msra.mxu0 %v1902
          %1906 = vmatprep.subr.bf16.mxu0 0
          %1907 = vmatpush1.bf16.msra.mxu0 0
          %1908 = vmatprep.subr.bf16.mxu0 0
          %1909 = vmatpush1.bf16.msra.mxu0 0
          %1910 = vmatprep.subr.bf16.mxu0 0
          %1911 = vmatpush1.bf16.msra.mxu0 0
          %1912 = vmatprep.subr.bf16.mxu0 0
          %1913 = vmatpush1.bf16.msra.mxu0 0
          %1914 = vmatprep.subr.bf16.mxu0 0
          %1915 = vmatpush1.bf16.msra.mxu0 0
          %1916 = vmatprep.subr.bf16.mxu0 0
          %1917 = vmatpush1.bf16.msra.mxu0 0
          %1918 = vmatprep.subr.bf16.mxu0 0
          %1919 = vmatpush1.bf16.msra.mxu0 0
          %1920 = vmatprep.subr.bf16.mxu0 0
          %1921 = vmatpush1.bf16.msra.mxu0 0
          %1922 = vmatprep.subr.bf16.mxu0 0
          %1923 = vmatpush1.bf16.msra.mxu0 0
          %1924 = vmatprep.subr.bf16.mxu0 0
          %1925 = vmatpush1.bf16.msra.mxu0 0
          %1926 = vmatprep.subr.bf16.mxu0 0
          %1927 = vmatpush1.bf16.msra.mxu0 0
          %1928 = vmatprep.subr.bf16.mxu0 0
          %1929 = vmatpush1.bf16.msra.mxu0 0
          %1930 = vmatprep.subr.bf16.mxu0 0
          %1931 = vmatpush1.bf16.msra.mxu0 0
          %1932 = vmatprep.subr.bf16.mxu0 0
          %1933 = vmatpush1.bf16.msra.mxu0 0
          %1934 = vmatprep.subr.bf16.mxu0 0
          %1935 = vmatpush1.bf16.msra.mxu0 0
          %1936 = vmatprep.mubr.bf16.mxu0 0
          %1937 = vmatmul.mubr.bf16.gmra.mrb[0].mxu0 %v1899
          %v1938 = vpop.f32.mrb[0].mxu0
          %v1939 = vadd.f32 0.0, %v1938
          %v1940 = vpop.f32.mrb[0].mxu0
          %v1941 = vpop.f32.mrb[0].mxu0
          %v1942 = vpop.f32.mrb[0].mxu0
          %1943 = vdwg.mxu0
          %v1945 = vsel %vm1257, %v1846, 0
          %v1948 = vsel %vm1576, %v1850, 0
          %1950 = vmatprep.subr.bf16.mxu0 0
          %1951 = vmatpush1.bf16.msra.mxu0 %v1948
          %1952 = vmatprep.subr.bf16.mxu0 0
          %1953 = vmatpush1.bf16.msra.mxu0 0
          %1954 = vmatprep.subr.bf16.mxu0 0
          %1955 = vmatpush1.bf16.msra.mxu0 0
          %1956 = vmatprep.subr.bf16.mxu0 0
          %1957 = vmatpush1.bf16.msra.mxu0 0
          %1958 = vmatprep.subr.bf16.mxu0 0
          %1959 = vmatpush1.bf16.msra.mxu0 0
          %1960 = vmatprep.subr.bf16.mxu0 0
          %1961 = vmatpush1.bf16.msra.mxu0 0
          %1962 = vmatprep.subr.bf16.mxu0 0
          %1963 = vmatpush1.bf16.msra.mxu0 0
          %1964 = vmatprep.subr.bf16.mxu0 0
          %1965 = vmatpush1.bf16.msra.mxu0 0
          %1966 = vmatprep.subr.bf16.mxu0 0
          %1967 = vmatpush1.bf16.msra.mxu0 0
          %1968 = vmatprep.subr.bf16.mxu0 0
          %1969 = vmatpush1.bf16.msra.mxu0 0
          %1970 = vmatprep.subr.bf16.mxu0 0
          %1971 = vmatpush1.bf16.msra.mxu0 0
          %1972 = vmatprep.subr.bf16.mxu0 0
          %1973 = vmatpush1.bf16.msra.mxu0 0
          %1974 = vmatprep.subr.bf16.mxu0 0
          %1975 = vmatpush1.bf16.msra.mxu0 0
          %1976 = vmatprep.subr.bf16.mxu0 0
          %1977 = vmatpush1.bf16.msra.mxu0 0
          %1978 = vmatprep.subr.bf16.mxu0 0
          %1979 = vmatpush1.bf16.msra.mxu0 0
          %1980 = vmatprep.subr.bf16.mxu0 0
          %1981 = vmatpush1.bf16.msra.mxu0 0
          %1982 = vmatprep.mubr.bf16.mxu0 0
          %1983 = vmatmul.mubr.bf16.gmra.mrb[0].mxu0 %v1945
          %v1984 = vpop.f32.mrb[0].mxu0
          %v1985 = vadd.f32 0.0, %v1984
          %v1986 = vpop.f32.mrb[0].mxu0
          %v1987 = vpop.f32.mrb[0].mxu0
          %v1988 = vpop.f32.mrb[0].mxu0
          %1989 = vdwg.mxu0
          %v1991 = vsel %vm1257, %v1847, 0
          %v1994 = vsel %vm1576, %v1851, 0
          %1996 = vmatprep.subr.bf16.mxu0 0
          %1997 = vmatpush1.bf16.msra.mxu0 %v1994
          %1998 = vmatprep.subr.bf16.mxu0 0
          %1999 = vmatpush1.bf16.msra.mxu0 0
          %2000 = vmatprep.subr.bf16.mxu0 0
          %2001 = vmatpush1.bf16.msra.mxu0 0
          %2002 = vmatprep.subr.bf16.mxu0 0
          %2003 = vmatpush1.bf16.msra.mxu0 0
          %2004 = vmatprep.subr.bf16.mxu0 0
          %2005 = vmatpush1.bf16.msra.mxu0 0
          %2006 = vmatprep.subr.bf16.mxu0 0
          %2007 = vmatpush1.bf16.msra.mxu0 0
          %2008 = vmatprep.subr.bf16.mxu0 0
          %2009 = vmatpush1.bf16.msra.mxu0 0
          %2010 = vmatprep.subr.bf16.mxu0 0
          %2011 = vmatpush1.bf16.msra.mxu0 0
          %2012 = vmatprep.subr.bf16.mxu0 0
          %2013 = vmatpush1.bf16.msra.mxu0 0
          %2014 = vmatprep.subr.bf16.mxu0 0
          %2015 = vmatpush1.bf16.msra.mxu0 0
          %2016 = vmatprep.subr.bf16.mxu0 0
          %2017 = vmatpush1.bf16.msra.mxu0 0
          %2018 = vmatprep.subr.bf16.mxu0 0
          %2019 = vmatpush1.bf16.msra.mxu0 0
          %2020 = vmatprep.subr.bf16.mxu0 0
          %2021 = vmatpush1.bf16.msra.mxu0 0
          %2022 = vmatprep.subr.bf16.mxu0 0
          %2023 = vmatpush1.bf16.msra.mxu0 0
          %2024 = vmatprep.subr.bf16.mxu0 0
          %2025 = vmatpush1.bf16.msra.mxu0 0
          %2026 = vmatprep.subr.bf16.mxu0 0
          %2027 = vmatpush1.bf16.msra.mxu0 0
          %2028 = vmatprep.mubr.bf16.mxu0 0
          %2029 = vmatmul.mubr.bf16.gmra.mrb[0].mxu0 %v1991
          %v2030 = vpop.f32.mrb[0].mxu0
          %v2031 = vadd.f32 0.0, %v2030
          %v2032 = vpop.f32.mrb[0].mxu0
          %v2033 = vpop.f32.mrb[0].mxu0
          %v2034 = vpop.f32.mrb[0].mxu0
          %2035 = vdwg.mxu0
          %v2036 = vsel %vm696, %v1893, 0.0
          %v2037 = vsel %vm696, %v1939, 0.0
          %v2038 = vadd.f32 %v2036, %v2037
          %v2039 = vsel %vm696, %v1985, 0.0
          %v2040 = vadd.f32 %v2038, %v2039
          %v2041 = vsel %vm696, %v2031, 0.0
          %v2042 = vadd.f32 %v2040, %v2041
          %v2043 = vld [vmem:[#allocation2] sm:$0xff]
          %v2044 = vpack.c.bf16 %v2043, %v2043
          %v2045 = vld [vmem:[%s9] sm:$0xf]
          %v2046 = vld [vmem:[%s9 + $0x4] sm:$0xf]
          %v2047 = vld [vmem:[%s9 + $0x8] sm:$0xf]
          %v2048 = vld [vmem:[%s9 + $0xc] sm:$0xf]
          %v2053 = vunpack.c.l.b16 %v2045
          %v2054 = vunpack.c.l.b16 %v2046
          %v2055 = vunpack.c.l.b16 %v2047
          %v2056 = vunpack.c.l.b16 %v2048
          %v2057 = vpack.c.b16 %v2054, %v2053
          %v2058 = vpack.c.b16 %v2056, %v2055
          %v2062 = vsel %vm696, %v2044, 0
          %2064 = vmatprep.subr.bf16.mxu0 0
          %2065 = vmatpush1.bf16.msra.mxu0 %v2057
          %2066 = vmatprep.subr.bf16.mxu0 0
          %2067 = vmatpush1.bf16.msra.mxu0 %v2058
          %2068 = vmatprep.subr.bf16.mxu0 0
          %2069 = vmatpush1.bf16.msra.mxu0 0
          %2070 = vmatprep.subr.bf16.mxu0 0
          %2071 = vmatpush1.bf16.msra.mxu0 0
          %2072 = vmatprep.subr.bf16.mxu0 0
          %2073 = vmatpush1.bf16.msra.mxu0 0
          %2074 = vmatprep.subr.bf16.mxu0 0
          %2075 = vmatpush1.bf16.msra.mxu0 0
          %2076 = vmatprep.subr.bf16.mxu0 0
          %2077 = vmatpush1.bf16.msra.mxu0 0
          %2078 = vmatprep.subr.bf16.mxu0 0
          %2079 = vmatpush1.bf16.msra.mxu0 0
          %2080 = vmatprep.subr.bf16.mxu0 0
          %2081 = vmatpush1.bf16.msra.mxu0 0
          %2082 = vmatprep.subr.bf16.mxu0 0
          %2083 = vmatpush1.bf16.msra.mxu0 0
          %2084 = vmatprep.subr.bf16.mxu0 0
          %2085 = vmatpush1.bf16.msra.mxu0 0
          %2086 = vmatprep.subr.bf16.mxu0 0
          %2087 = vmatpush1.bf16.msra.mxu0 0
          %2088 = vmatprep.subr.bf16.mxu0 0
          %2089 = vmatpush1.bf16.msra.mxu0 0
          %2090 = vmatprep.subr.bf16.mxu0 0
          %2091 = vmatpush1.bf16.msra.mxu0 0
          %2092 = vmatprep.subr.bf16.mxu0 0
          %2093 = vmatpush1.bf16.msra.mxu0 0
          %2094 = vmatprep.subr.bf16.mxu0 0
          %2095 = vmatpush1.bf16.msra.mxu0 0
          %2096 = vmatprep.mubr.bf16.mxu0 0
          %2097 = vmatmul.mubr.bf16.gmra.mrb[0].mxu0 %v2062
          %v2098 = vpop.f32.mrb[0].mxu0
          %v2099 = vadd.f32 %v2042, %v2098
          %v2100 = vpop.f32.mrb[0].mxu0
          %v2101 = vpop.f32.mrb[0].mxu0
          %v2102 = vpop.f32.mrb[0].mxu0
          %2103 = vdwg.mxu0
          %v2104 = vld [vmem:[%s11] sm:$0x1]
          %v2106 = vlaneseq
          %v2107 = vshrl.u32 %v2106, 7
          %v2108 = vsub.s32 0, %v2107
          %v2109 = vrot.slane %v2104, %v2108
          %v2111 = vadd.f32 %v2099, %v2109
          %2112 = vst.msk [vmem:[%s585] sm:$0xff] %vm696, %v2111
        $region104: #{tpu_custom_call.1} parent=67 // pred_fallthru
          _
        %s2113 = sand.u32 %s336, 1
        %s2114 = scalar_lea.sflag [#allocation8], %s2113
        %s2115 = sand.u32 %s336, 1
        %s2116 = smul.addr %s2115, 8
        %s2117 = scalar_lea.vmem [#allocation18], %s2116
        // Predicated region
        $region105: #{tpu_custom_call.1} parent=67 // pred_check
          %p2118 = pneg %p346
        $region106: #{tpu_custom_call.1} parent=67 // pred_check_branch
          %2120 = sbr.rel (%p2118) target = $region108
        $region107: #{tpu_custom_call.1} parent=67 // pred_region
          %s2122 = ssub.s32 128, 128
          %2123 = vsyncadd %s2114, %s2122
          %s2124 = sadd.s32 %s40, %s39
          %s2125 = smul.addr %s2124, 128
          %s2126 = scalar_lea.hbm %s12, %s2125
          %s2128 = sshll.u32 %s2117, 4
          %s2129 = int_to_ptr.vmem [resolvable:$true] %s2128
          %2131 = dma.vmem_to_hbm [thread:$0]  %s2129, 128, %s2126, %s2114
        $region108: #{tpu_custom_call.1} parent=67 // pred_fallthru
          _
      $region68: #{tpu_custom_call.1} parent=5 // pred_fallthru
        _
      %p2132 = scmp.le.s32.totalorder 2, %s29
      // Predicated region
      $region109: #{tpu_custom_call.1} parent=5 // pred_check
        %p2133 = pneg %p2132
      $region110: #{tpu_custom_call.1} parent=5 // pred_check_branch
        %2135 = sbr.rel (%p2133) target = $region112
      $region111: #{tpu_custom_call.1} parent=5 // pred_region
        %s2136 = ssub.s32 %s29, 2
        // Predicated region
        $region113: #{tpu_custom_call.1} parent=111 // pred_check
          %p2137 = pneg %p352
        $region114: #{tpu_custom_call.1} parent=111 // pred_check_branch
          %2139 = sbr.rel (%p2137) target = $region116
        $region115: #{tpu_custom_call.1} parent=111 // pred_region
          %s2140 = sand.u32 %s337, 1
          %s2141 = scalar_lea.sflag [#allocation8], %s2140
          %s2142 = sand.u32 %s337, 1
          %s2143 = smul.addr %s2142, 8
          %s2144 = scalar_lea.vmem [#allocation18], %s2143
          %2145 = dma.done %s2141, 128
        $region116: #{tpu_custom_call.1} parent=111 // pred_fallthru
          _
      $region112: #{tpu_custom_call.1} parent=5 // pred_fallthru
        _
    $region6: #{tpu_custom_call.1} parent=1 // loop_footer
      %s33 = sadd.s32 1, %s29
    $region7: #{tpu_custom_call.1} parent=1 // loop_footer_branch
      %28 = sbr.rel target = $region3
    $region8: #{tpu_custom_call.1} parent=1 // loop_exit
      _
    %2146 = vsyncpa [#allocation7], 1
    %s2147 = scalar_lea.sflag [#allocation7], 1
    %2148 = vsyncpa %s2147, 1
    %2149 = vsyncpa [#allocation10], 1
    %s2150 = scalar_lea.sflag [#allocation10], 1
    %2151 = vsyncpa %s2150, 1
    %2152 = vsyncpa [#allocation13], 1
    %2153 = vsyncpa [#allocation16], 1
    %2154 = vsyncpa [#allocation8], 1
    %s2155 = scalar_lea.sflag [#allocation8], 1
    %2156 = vsyncpa %s2155, 1

</llo_original>
